<compile_context>
chip_gen: v6e
topology: v6e:2x2x1
jax: 0.10.0
libtpu: 0.0.40
codegen_flags: <defaults>
</compile_context>

<pallas_src>
import functools

import jax
import jax.numpy as jnp
from jax import lax
from jax.experimental import pallas as pl
from jax.experimental.pallas import tpu as pltpu

_LANE = 128


def _round_up(n, m=_LANE):
    return ((n + m - 1) // m) * m


def _appnp2_bn_kernel(x_ref, a_ref, w1t_ref, p1_ref, w2t_ref, p2_ref, o_ref,
                      *, alpha, K, eps, mm_dtype):
    # a_ref is already (1 - alpha)-scaled and in the MXU operand dtype (glue-side).
    a_s = a_ref[...]

    def appnp(h):
        ah = alpha * h                        # loop-invariant, computed once
        z = h
        for _ in range(K):                    # K is a Python int -> fully unrolled
            z = jnp.dot(a_s, z.astype(mm_dtype),
                        preferred_element_type=jnp.float32) + ah
        return z

    def batch_norm(z, gamma, beta):
        # Training-mode batch stats, biased variance (matches nn.BatchNorm1d fwd).
        # Single traversal: var = E[z^2] - E[z]^2 (clamped for rounding safety).
        mean = jnp.mean(z, axis=0, keepdims=True)
        mean_sq = jnp.mean(z * z, axis=0, keepdims=True)
        var = jnp.maximum(mean_sq - mean * mean, 0.0)
        return (z - mean) * lax.rsqrt(var + eps) * gamma + beta

    # Packed per-layer params: row 0 = bias, row 1 = gamma, row 2 = beta (f32).
    b1, g1, be1 = p1_ref[0:1, :], p1_ref[1:2, :], p1_ref[2:3, :]
    b2, g2, be2 = p2_ref[0:1, :], p2_ref[1:2, :], p2_ref[2:3, :]

    # Layer 1: Linear -> APPNP -> BatchNorm -> ReLU
    h1 = jnp.dot(x_ref[...], w1t_ref[...],
                 preferred_element_type=jnp.float32) + b1
    r1 = jnp.maximum(batch_norm(appnp(h1), g1, be1), 0.0)

    # Layer 2: Linear -> APPNP -> BatchNorm
    h2 = jnp.dot(r1.astype(mm_dtype), w2t_ref[...],
                 preferred_element_type=jnp.float32) + b2
    o_ref[...] = batch_norm(appnp(h2), g2, be2).astype(o_ref.dtype)


def build_norm_adj(edge_index, num_nodes):
    """Dense GCN-normalized adjacency with self-loops: D^-1/2 (A + I) D^-1/2."""
    src = edge_index[0]
    dst = edge_index[1]
    loop = jnp.arange(num_nodes, dtype=edge_index.dtype)
    src = jnp.concatenate([src, loop])
    dst = jnp.concatenate([dst, loop])
    a = jnp.zeros((num_nodes, num_nodes), jnp.float32).at[dst, src].add(1.0)
    deg = a.sum(axis=1)
    dinv = jnp.where(deg > 0, 1.0 / jnp.sqrt(deg), 0.0)
    return dinv[:, None] * a * dinv[None, :]


def prepare_propagation(edge_index, num_nodes, *, alpha=0.1,
                        matmul_dtype=jnp.bfloat16):
    """Static per-graph preprocessing: (1-alpha) * D^-1/2 (A+I) D^-1/2, pre-cast
    to the MXU operand dtype. Compute ONCE per graph and reuse across forwards
    (the scatter-add glue otherwise dominates wall time at small shapes)."""
    a_hat = build_norm_adj(edge_index, num_nodes)
    return ((1.0 - float(alpha)) * a_hat).astype(matmul_dtype)


def prepare_params(params, *, matmul_dtype=jnp.bfloat16):
    """Static per-model preprocessing: lane-pad and pack the parameters.

    Returns (w1t, p1, w2t, p2, h, c):
      w1t [F, Hp] / w2t [Hp, Cp] in matmul_dtype (padded columns/rows are zero),
      p1  [8, Hp] / p2 [8, Cp] f32 packed (row 0 bias, row 1 gamma, row 2 beta).
    Padded weight/bias/gamma/beta lanes are exactly 0, so padded columns stay
    exactly zero through Linear, APPNP, BN (rsqrt(0+eps) finite, gamma=0), ReLU.
    """
    w1, b1 = params["W1"], params["b1"]        # [H, F], [H]   (torch Linear layout)
    w2, b2 = params["W2"], params["b2"]        # [C, H], [C]
    g1, be1 = params["gamma1"], params["beta1"]
    g2, be2 = params["gamma2"], params["beta2"]
    f = w1.shape[1]
    h = w1.shape[0]
    c = w2.shape[0]
    hp, cp = _round_up(h), _round_up(c)

    w1t = (jnp.zeros((f, hp), jnp.float32).at[:, :h]
           .set(w1.T.astype(jnp.float32)).astype(matmul_dtype))
    w2t = (jnp.zeros((hp, cp), jnp.float32).at[:h, :c]
           .set(w2.T.astype(jnp.float32)).astype(matmul_dtype))

    def pack(bias, gamma, beta, width, ncols):
        p = jnp.zeros((8, width), jnp.float32)
        p = p.at[0, :ncols].set(bias.astype(jnp.float32))
        p = p.at[1, :ncols].set(gamma.astype(jnp.float32))
        p = p.at[2, :ncols].set(beta.astype(jnp.float32))
        return p

    p1 = pack(b1, g1, be1, hp, h)
    p2 = pack(b2, g2, be2, cp, c)
    return w1t, p1, w2t, p2, h, c


def appnp2simp_bn_forward(x, a_scaled, prepped, *, alpha=0.1, K=10, eps=1e-5,
                          matmul_dtype=jnp.bfloat16):
    """Fused forward. `a_scaled` and `prepped` come from prepare_propagation /
    prepare_params (computed once per graph/model, NOT per call)."""
    w1t, p1, w2t, p2, h, c = prepped
    n, f = x.shape
    hp = w1t.shape[1]
    cp = w2t.shape[1]
    itemsize = jnp.dtype(matmul_dtype).itemsize

    # Advisory cost estimate using LOGICAL dims (h, c), not padded hp/cp.
    flops = (2 * n * f * h + 2 * K * n * n * h
             + 2 * n * h * c + 2 * K * n * n * c)
    bytes_accessed = (itemsize * (n * f + n * n + f * hp + hp * cp)
                      + 4 * (8 * hp + 8 * cp + n * cp))

    kern = functools.partial(_appnp2_bn_kernel, alpha=float(alpha), K=int(K),
                             eps=float(eps), mm_dtype=matmul_dtype)
    vmem_spec = pl.BlockSpec(memory_space=pltpu.MemorySpace.VMEM)
    out = pl.pallas_call(
        kern,
        out_shape=jax.ShapeDtypeStruct((n, cp), jnp.float32),
        in_specs=[vmem_spec] * 6,
        out_specs=vmem_spec,
        cost_estimate=pl.CostEstimate(flops=flops,
                                      transcendentals=2 * (h + c),
                                      bytes_accessed=bytes_accessed),
    )(x.astype(matmul_dtype), a_scaled, w1t, p1, w2t, p2)
    # TODO(synk): large-graph path — row-tile A_scaled [tm, N] (bf16, Buffered(2-3))
    # with z [N, Hp] f32 kept as persistent scratch, dimension_semantics with the
    # row axis "parallel" (2 TCs on v7x) and K "arbitrary"; budget for v7x's
    # 64 MiB physical / 32 MiB scoped VMEM (2*tm*N*2B + 2*N*Hp*4B <= ~48 MiB via
    # vmem_limit_bytes), tm >= 256 on v6e/v7x (>=128 on v5e) for MXU fill, and
    # make BN stats a two-phase cross-tile reduction.
    return out[:, :c]


def _reference(x, edge_index, params, *, alpha=0.1, K=10, eps=1e-5):
    a_hat = build_norm_adj(edge_index, x.shape[0])

    def appnp(h):
        z = h
        for _ in range(K):
            z = (1.0 - alpha) * (a_hat @ z) + alpha * h
        return z

    def bn(z, gamma, beta):
        m = z.mean(axis=0, keepdims=True)
        v = ((z - m) ** 2).mean(axis=0, keepdims=True)
        return gamma * (z - m) / jnp.sqrt(v + eps) + beta

    h1 = x @ params["W1"].T + params["b1"]
    r1 = jnp.maximum(bn(appnp(h1), params["gamma1"], params["beta1"]), 0.0)
    h2 = r1 @ params["W2"].T + params["b2"]
    return bn(appnp(h2), params["gamma2"], params["beta2"])


if __name__ == "__main__":
    key = jax.random.PRNGKey(0)
    k_x, k_e, k_w1, k_b1, k_w2, k_b2 = jax.random.split(key, 6)

    # Small graph consistent with the module's forward:
    #   x: [num_nodes, in_features], edge_index: [2, num_edges]
    num_nodes = 64
    in_features = 32
    hidden_dim = 32
    num_classes = 16
    num_edges = 256
    alpha = 0.1
    K = 10

    x = jax.random.normal(k_x, (num_nodes, in_features), dtype=jnp.float32)
    edge_index = jax.random.randint(k_e, (2, num_edges), 0, num_nodes,
                                    dtype=jnp.int32)

    # Deterministic synthetic parameters (PyTorch Linear layout, BN defaults).
    params = {
        "W1": 0.1 * jax.random.normal(k_w1, (hidden_dim, in_features), jnp.float32),
        "b1": 0.01 * jax.random.normal(k_b1, (hidden_dim,), jnp.float32),
        "gamma1": jnp.ones((hidden_dim,), jnp.float32),
        "beta1": jnp.zeros((hidden_dim,), jnp.float32),
        "W2": 0.1 * jax.random.normal(k_w2, (num_classes, hidden_dim), jnp.float32),
        "b2": 0.01 * jax.random.normal(k_b2, (num_classes,), jnp.float32),
        "gamma2": jnp.ones((num_classes,), jnp.float32),
        "beta2": jnp.zeros((num_classes,), jnp.float32),
    }
    # TODO(synk): module's `dropout` arg is unused in the PyTorch forward
    # (APPNP dropout=0) and BN running-stat updates are a training side effect,
    # not part of the forward output; nothing to translate.

    ref = _reference(x, edge_index, params, alpha=alpha, K=K)

    # Per-graph / per-model preprocessing done ONCE and reused across calls
    # (scatter-add + padding/casts are hoisted out of the forward path).
    a_f32 = prepare_propagation(edge_index, num_nodes, alpha=alpha,
                                matmul_dtype=jnp.float32)
    a_bf16 = a_f32.astype(jnp.bfloat16)
    prepped_f32 = prepare_params(params, matmul_dtype=jnp.float32)
    prepped_bf16 = prepare_params(params, matmul_dtype=jnp.bfloat16)

    # f32 MXU path: validation only — bitwise-close to the reference.
    out_f32 = appnp2simp_bn_forward(x, a_f32, prepped_f32, alpha=alpha, K=K,
                                    matmul_dtype=jnp.float32)
    out_f32 = jax.block_until_ready(out_f32)
    assert out_f32.shape == (num_nodes, num_classes)
    assert jnp.allclose(out_f32, ref, rtol=1e-3, atol=1e-3), "f32 mismatch vs reference"

    # bf16 MXU path (default on v5e/v6e/v7x — all bf16-native MXUs): loose
    # tolerance — 20 serial matmuls amplify bf16 operand rounding, but BN keeps
    # outputs O(1).
    out_bf16 = appnp2simp_bn_forward(x, a_bf16, prepped_bf16, alpha=alpha, K=K,
                                     matmul_dtype=jnp.bfloat16)
    out_bf16 = jax.block_until_ready(out_bf16)
    assert out_bf16.shape == (num_nodes, num_classes)
    assert jnp.all(jnp.isfinite(out_bf16))
    assert jnp.allclose(out_bf16, ref, rtol=1e-1, atol=1e-1), "bf16 mismatch vs reference"

    print("KERNEL_OK")
</pallas_src>

<mosaic_0001>
module attributes {stable_mosaic.version = 11 : i64} {
  func.func @_appnp2_bn_kernel(%arg0: memref<64x32xf32, #tpu.memory_space<vmem>>, %arg1: memref<64x64xf32, #tpu.memory_space<vmem>>, %arg2: memref<32x128xf32, #tpu.memory_space<vmem>>, %arg3: memref<8x128xf32, #tpu.memory_space<vmem>>, %arg4: memref<128x128xf32, #tpu.memory_space<vmem>>, %arg5: memref<8x128xf32, #tpu.memory_space<vmem>>, %arg6: memref<64x128xf32, #tpu.memory_space<vmem>>) attributes {dimension_semantics = [], scalar_prefetch = 0 : i64, scratch_operands = 0 : i64, tpu.core_type = #tpu.core_type<tc>} {
    %c0 = arith.constant 0 : index
    %c0_0 = arith.constant 0 : index
    %0 = vector.load %arg1[%c0, %c0_0] : memref<64x64xf32, #tpu.memory_space<vmem>>, vector<64x64xf32>
    %c0_1 = arith.constant 0 : index
    %c0_2 = arith.constant 0 : index
    %1 = vector.load %arg3[%c0_1, %c0_2] : memref<8x128xf32, #tpu.memory_space<vmem>>, vector<1x128xf32>
    %c1 = arith.constant 1 : index
    %c0_3 = arith.constant 0 : index
    %2 = vector.load %arg3[%c1, %c0_3] : memref<8x128xf32, #tpu.memory_space<vmem>>, vector<1x128xf32>
    %c2 = arith.constant 2 : index
    %c0_4 = arith.constant 0 : index
    %3 = vector.load %arg3[%c2, %c0_4] : memref<8x128xf32, #tpu.memory_space<vmem>>, vector<1x128xf32>
    %c0_5 = arith.constant 0 : index
    %c0_6 = arith.constant 0 : index
    %4 = vector.load %arg5[%c0_5, %c0_6] : memref<8x128xf32, #tpu.memory_space<vmem>>, vector<1x128xf32>
    %c1_7 = arith.constant 1 : index
    %c0_8 = arith.constant 0 : index
    %5 = vector.load %arg5[%c1_7, %c0_8] : memref<8x128xf32, #tpu.memory_space<vmem>>, vector<1x128xf32>
    %c2_9 = arith.constant 2 : index
    %c0_10 = arith.constant 0 : index
    %6 = vector.load %arg5[%c2_9, %c0_10] : memref<8x128xf32, #tpu.memory_space<vmem>>, vector<1x128xf32>
    %c0_11 = arith.constant 0 : index
    %c0_12 = arith.constant 0 : index
    %7 = vector.load %arg0[%c0_11, %c0_12] : memref<64x32xf32, #tpu.memory_space<vmem>>, vector<64x32xf32>
    %c0_13 = arith.constant 0 : index
    %c0_14 = arith.constant 0 : index
    %8 = vector.load %arg2[%c0_13, %c0_14] : memref<32x128xf32, #tpu.memory_space<vmem>>, vector<32x128xf32>
    %cst = arith.constant dense<0.000000e+00> : vector<64x128xf32>
    %9 = tpu.matmul %7, %8, %cst {dimension_numbers = #tpu.dot_dimension_numbers<[1], [0], [0], [1], [0, 0, 1, 1], [], []>} : vector<64x32xf32>, vector<32x128xf32>, vector<64x128xf32> -> vector<64x128xf32>
    %10 = vector.broadcast %1 : vector<1x128xf32> to vector<64x128xf32>
    %11 = arith.addf %9, %10 : vector<64x128xf32>
    %cst_15 = arith.constant 1.000000e-01 : f32
    %12 = vector.broadcast %cst_15 : f32 to vector<64x128xf32>
    %13 = arith.mulf %12, %11 : vector<64x128xf32>
    %cst_16 = arith.constant dense<0.000000e+00> : vector<64x128xf32>
    %14 = tpu.matmul %0, %11, %cst_16 {dimension_numbers = #tpu.dot_dimension_numbers<[1], [0], [0], [1], [0, 0, 1, 1], [], []>} : vector<64x64xf32>, vector<64x128xf32>, vector<64x128xf32> -> vector<64x128xf32>
    %15 = arith.addf %14, %13 : vector<64x128xf32>
    %cst_17 = arith.constant dense<0.000000e+00> : vector<64x128xf32>
    %16 = tpu.matmul %0, %15, %cst_17 {dimension_numbers = #tpu.dot_dimension_numbers<[1], [0], [0], [1], [0, 0, 1, 1], [], []>} : vector<64x64xf32>, vector<64x128xf32>, vector<64x128xf32> -> vector<64x128xf32>
    %17 = arith.addf %16, %13 : vector<64x128xf32>
    %cst_18 = arith.constant dense<0.000000e+00> : vector<64x128xf32>
    %18 = tpu.matmul %0, %17, %cst_18 {dimension_numbers = #tpu.dot_dimension_numbers<[1], [0], [0], [1], [0, 0, 1, 1], [], []>} : vector<64x64xf32>, vector<64x128xf32>, vector<64x128xf32> -> vector<64x128xf32>
    %19 = arith.addf %18, %13 : vector<64x128xf32>
    %cst_19 = arith.constant dense<0.000000e+00> : vector<64x128xf32>
    %20 = tpu.matmul %0, %19, %cst_19 {dimension_numbers = #tpu.dot_dimension_numbers<[1], [0], [0], [1], [0, 0, 1, 1], [], []>} : vector<64x64xf32>, vector<64x128xf32>, vector<64x128xf32> -> vector<64x128xf32>
    %21 = arith.addf %20, %13 : vector<64x128xf32>
    %cst_20 = arith.constant dense<0.000000e+00> : vector<64x128xf32>
    %22 = tpu.matmul %0, %21, %cst_20 {dimension_numbers = #tpu.dot_dimension_numbers<[1], [0], [0], [1], [0, 0, 1, 1], [], []>} : vector<64x64xf32>, vector<64x128xf32>, vector<64x128xf32> -> vector<64x128xf32>
    %23 = arith.addf %22, %13 : vector<64x128xf32>
    %cst_21 = arith.constant dense<0.000000e+00> : vector<64x128xf32>
    %24 = tpu.matmul %0, %23, %cst_21 {dimension_numbers = #tpu.dot_dimension_numbers<[1], [0], [0], [1], [0, 0, 1, 1], [], []>} : vector<64x64xf32>, vector<64x128xf32>, vector<64x128xf32> -> vector<64x128xf32>
    %25 = arith.addf %24, %13 : vector<64x128xf32>
    %cst_22 = arith.constant dense<0.000000e+00> : vector<64x128xf32>
    %26 = tpu.matmul %0, %25, %cst_22 {dimension_numbers = #tpu.dot_dimension_numbers<[1], [0], [0], [1], [0, 0, 1, 1], [], []>} : vector<64x64xf32>, vector<64x128xf32>, vector<64x128xf32> -> vector<64x128xf32>
    %27 = arith.addf %26, %13 : vector<64x128xf32>
    %cst_23 = arith.constant dense<0.000000e+00> : vector<64x128xf32>
    %28 = tpu.matmul %0, %27, %cst_23 {dimension_numbers = #tpu.dot_dimension_numbers<[1], [0], [0], [1], [0, 0, 1, 1], [], []>} : vector<64x64xf32>, vector<64x128xf32>, vector<64x128xf32> -> vector<64x128xf32>
    %29 = arith.addf %28, %13 : vector<64x128xf32>
    %cst_24 = arith.constant dense<0.000000e+00> : vector<64x128xf32>
    %30 = tpu.matmul %0, %29, %cst_24 {dimension_numbers = #tpu.dot_dimension_numbers<[1], [0], [0], [1], [0, 0, 1, 1], [], []>} : vector<64x64xf32>, vector<64x128xf32>, vector<64x128xf32> -> vector<64x128xf32>
    %31 = arith.addf %30, %13 : vector<64x128xf32>
    %cst_25 = arith.constant dense<0.000000e+00> : vector<64x128xf32>
    %32 = tpu.matmul %0, %31, %cst_25 {dimension_numbers = #tpu.dot_dimension_numbers<[1], [0], [0], [1], [0, 0, 1, 1], [], []>} : vector<64x64xf32>, vector<64x128xf32>, vector<64x128xf32> -> vector<64x128xf32>
    %33 = arith.addf %32, %13 : vector<64x128xf32>
    %cst_26 = arith.constant dense<0.000000e+00> : vector<128xf32>
    %34 = vector.multi_reduction <add>, %33, %cst_26 [0] : vector<64x128xf32> to vector<128xf32>
    %35 = vector.shape_cast %34 : vector<128xf32> to vector<1x128xf32>
    %cst_27 = arith.constant 6.400000e+01 : f32
    %36 = vector.broadcast %cst_27 : f32 to vector<1x128xf32>
    %37 = arith.divf %35, %36 : vector<1x128xf32>
    %38 = arith.mulf %33, %33 : vector<64x128xf32>
    %cst_28 = arith.constant dense<0.000000e+00> : vector<128xf32>
    %39 = vector.multi_reduction <add>, %38, %cst_28 [0] : vector<64x128xf32> to vector<128xf32>
    %40 = vector.shape_cast %39 : vector<128xf32> to vector<1x128xf32>
    %cst_29 = arith.constant 6.400000e+01 : f32
    %41 = vector.broadcast %cst_29 : f32 to vector<1x128xf32>
    %42 = arith.divf %40, %41 : vector<1x128xf32>
    %43 = arith.mulf %37, %37 : vector<1x128xf32>
    %44 = arith.subf %42, %43 : vector<1x128xf32>
    %cst_30 = arith.constant 0.000000e+00 : f32
    %45 = vector.broadcast %cst_30 : f32 to vector<1x128xf32>
    %46 = arith.maximumf %44, %45 : vector<1x128xf32>
    %47 = vector.broadcast %37 : vector<1x128xf32> to vector<64x128xf32>
    %48 = arith.subf %33, %47 : vector<64x128xf32>
    %cst_31 = arith.constant 9.99999974E-6 : f32
    %49 = vector.broadcast %cst_31 : f32 to vector<1x128xf32>
    %50 = arith.addf %46, %49 : vector<1x128xf32>
    %51 = math.rsqrt %50 : vector<1x128xf32>
    %52 = vector.broadcast %51 : vector<1x128xf32> to vector<64x128xf32>
    %53 = arith.mulf %48, %52 : vector<64x128xf32>
    %54 = vector.broadcast %2 : vector<1x128xf32> to vector<64x128xf32>
    %55 = arith.mulf %53, %54 : vector<64x128xf32>
    %56 = vector.broadcast %3 : vector<1x128xf32> to vector<64x128xf32>
    %57 = arith.addf %55, %56 : vector<64x128xf32>
    %cst_32 = arith.constant 0.000000e+00 : f32
    %58 = vector.broadcast %cst_32 : f32 to vector<64x128xf32>
    %59 = arith.maximumf %57, %58 : vector<64x128xf32>
    %c0_33 = arith.constant 0 : index
    %c0_34 = arith.constant 0 : index
    %60 = vector.load %arg4[%c0_33, %c0_34] : memref<128x128xf32, #tpu.memory_space<vmem>>, vector<128x128xf32>
    %cst_35 = arith.constant dense<0.000000e+00> : vector<64x128xf32>
    %61 = tpu.matmul %59, %60, %cst_35 {dimension_numbers = #tpu.dot_dimension_numbers<[1], [0], [0], [1], [0, 0, 1, 1], [], []>} : vector<64x128xf32>, vector<128x128xf32>, vector<64x128xf32> -> vector<64x128xf32>
    %62 = vector.broadcast %4 : vector<1x128xf32> to vector<64x128xf32>
    %63 = arith.addf %61, %62 : vector<64x128xf32>
    %cst_36 = arith.constant 1.000000e-01 : f32
    %64 = vector.broadcast %cst_36 : f32 to vector<64x128xf32>
    %65 = arith.mulf %64, %63 : vector<64x128xf32>
    %cst_37 = arith.constant dense<0.000000e+00> : vector<64x128xf32>
    %66 = tpu.matmul %0, %63, %cst_37 {dimension_numbers = #tpu.dot_dimension_numbers<[1], [0], [0], [1], [0, 0, 1, 1], [], []>} : vector<64x64xf32>, vector<64x128xf32>, vector<64x128xf32> -> vector<64x128xf32>
    %67 = arith.addf %66, %65 : vector<64x128xf32>
    %cst_38 = arith.constant dense<0.000000e+00> : vector<64x128xf32>
    %68 = tpu.matmul %0, %67, %cst_38 {dimension_numbers = #tpu.dot_dimension_numbers<[1], [0], [0], [1], [0, 0, 1, 1], [], []>} : vector<64x64xf32>, vector<64x128xf32>, vector<64x128xf32> -> vector<64x128xf32>
    %69 = arith.addf %68, %65 : vector<64x128xf32>
    %cst_39 = arith.constant dense<0.000000e+00> : vector<64x128xf32>
    %70 = tpu.matmul %0, %69, %cst_39 {dimension_numbers = #tpu.dot_dimension_numbers<[1], [0], [0], [1], [0, 0, 1, 1], [], []>} : vector<64x64xf32>, vector<64x128xf32>, vector<64x128xf32> -> vector<64x128xf32>
    %71 = arith.addf %70, %65 : vector<64x128xf32>
    %cst_40 = arith.constant dense<0.000000e+00> : vector<64x128xf32>
    %72 = tpu.matmul %0, %71, %cst_40 {dimension_numbers = #tpu.dot_dimension_numbers<[1], [0], [0], [1], [0, 0, 1, 1], [], []>} : vector<64x64xf32>, vector<64x128xf32>, vector<64x128xf32> -> vector<64x128xf32>
    %73 = arith.addf %72, %65 : vector<64x128xf32>
    %cst_41 = arith.constant dense<0.000000e+00> : vector<64x128xf32>
    %74 = tpu.matmul %0, %73, %cst_41 {dimension_numbers = #tpu.dot_dimension_numbers<[1], [0], [0], [1], [0, 0, 1, 1], [], []>} : vector<64x64xf32>, vector<64x128xf32>, vector<64x128xf32> -> vector<64x128xf32>
    %75 = arith.addf %74, %65 : vector<64x128xf32>
    %cst_42 = arith.constant dense<0.000000e+00> : vector<64x128xf32>
    %76 = tpu.matmul %0, %75, %cst_42 {dimension_numbers = #tpu.dot_dimension_numbers<[1], [0], [0], [1], [0, 0, 1, 1], [], []>} : vector<64x64xf32>, vector<64x128xf32>, vector<64x128xf32> -> vector<64x128xf32>
    %77 = arith.addf %76, %65 : vector<64x128xf32>
    %cst_43 = arith.constant dense<0.000000e+00> : vector<64x128xf32>
    %78 = tpu.matmul %0, %77, %cst_43 {dimension_numbers = #tpu.dot_dimension_numbers<[1], [0], [0], [1], [0, 0, 1, 1], [], []>} : vector<64x64xf32>, vector<64x128xf32>, vector<64x128xf32> -> vector<64x128xf32>
    %79 = arith.addf %78, %65 : vector<64x128xf32>
    %cst_44 = arith.constant dense<0.000000e+00> : vector<64x128xf32>
    %80 = tpu.matmul %0, %79, %cst_44 {dimension_numbers = #tpu.dot_dimension_numbers<[1], [0], [0], [1], [0, 0, 1, 1], [], []>} : vector<64x64xf32>, vector<64x128xf32>, vector<64x128xf32> -> vector<64x128xf32>
    %81 = arith.addf %80, %65 : vector<64x128xf32>
    %cst_45 = arith.constant dense<0.000000e+00> : vector<64x128xf32>
    %82 = tpu.matmul %0, %81, %cst_45 {dimension_numbers = #tpu.dot_dimension_numbers<[1], [0], [0], [1], [0, 0, 1, 1], [], []>} : vector<64x64xf32>, vector<64x128xf32>, vector<64x128xf32> -> vector<64x128xf32>
    %83 = arith.addf %82, %65 : vector<64x128xf32>
    %cst_46 = arith.constant dense<0.000000e+00> : vector<64x128xf32>
    %84 = tpu.matmul %0, %83, %cst_46 {dimension_numbers = #tpu.dot_dimension_numbers<[1], [0], [0], [1], [0, 0, 1, 1], [], []>} : vector<64x64xf32>, vector<64x128xf32>, vector<64x128xf32> -> vector<64x128xf32>
    %85 = arith.addf %84, %65 : vector<64x128xf32>
    %cst_47 = arith.constant dense<0.000000e+00> : vector<128xf32>
    %86 = vector.multi_reduction <add>, %85, %cst_47 [0] : vector<64x128xf32> to vector<128xf32>
    %87 = vector.shape_cast %86 : vector<128xf32> to vector<1x128xf32>
    %cst_48 = arith.constant 6.400000e+01 : f32
    %88 = vector.broadcast %cst_48 : f32 to vector<1x128xf32>
    %89 = arith.divf %87, %88 : vector<1x128xf32>
    %90 = arith.mulf %85, %85 : vector<64x128xf32>
    %cst_49 = arith.constant dense<0.000000e+00> : vector<128xf32>
    %91 = vector.multi_reduction <add>, %90, %cst_49 [0] : vector<64x128xf32> to vector<128xf32>
    %92 = vector.shape_cast %91 : vector<128xf32> to vector<1x128xf32>
    %cst_50 = arith.constant 6.400000e+01 : f32
    %93 = vector.broadcast %cst_50 : f32 to vector<1x128xf32>
    %94 = arith.divf %92, %93 : vector<1x128xf32>
    %95 = arith.mulf %89, %89 : vector<1x128xf32>
    %96 = arith.subf %94, %95 : vector<1x128xf32>
    %cst_51 = arith.constant 0.000000e+00 : f32
    %97 = vector.broadcast %cst_51 : f32 to vector<1x128xf32>
    %98 = arith.maximumf %96, %97 : vector<1x128xf32>
    %99 = vector.broadcast %89 : vector<1x128xf32> to vector<64x128xf32>
    %100 = arith.subf %85, %99 : vector<64x128xf32>
    %cst_52 = arith.constant 9.99999974E-6 : f32
    %101 = vector.broadcast %cst_52 : f32 to vector<1x128xf32>
    %102 = arith.addf %98, %101 : vector<1x128xf32>
    %103 = math.rsqrt %102 : vector<1x128xf32>
    %104 = vector.broadcast %103 : vector<1x128xf32> to vector<64x128xf32>
    %105 = arith.mulf %100, %104 : vector<64x128xf32>
    %106 = vector.broadcast %5 : vector<1x128xf32> to vector<64x128xf32>
    %107 = arith.mulf %105, %106 : vector<64x128xf32>
    %108 = vector.broadcast %6 : vector<1x128xf32> to vector<64x128xf32>
    %109 = arith.addf %107, %108 : vector<64x128xf32>
    %c0_53 = arith.constant 0 : index
    %c0_54 = arith.constant 0 : index
    %110 = vector.load %arg6[%c0_53, %c0_54] : memref<64x128xf32, #tpu.memory_space<vmem>>, vector<64x128xf32>
    tpu.vector_store %arg6[%c0_53, %c0_54], %109 {strides = array<i32>} : memref<64x128xf32, #tpu.memory_space<vmem>>, vector<64x128xf32>,
    return
  }
}

</mosaic_0001>

<llo_original>
// kernel: tpu_custom_call.1
$region0: #{tpu_custom_call.1}
  #allocation0 [shape = 'u32[]', space=smem, size = 0x4, offset = 0x4, fixed_abs, tag = 'smem constant byte address 0x4 - core index']
  #allocation1 [shape = 'u32[144,128]{1,0:T(1,128)}', space=vmem, size = 0x12000, scoped, tag = 'internal scratch']
  %s0 = inlined_call_operand.vmem [shape: f32[64,32], index: 0, kind: input, shape index: {}]
  %s1 = inlined_call_operand.vmem [shape: f32[64,64], index: 1, kind: input, shape index: {}]
  %s2 = inlined_call_operand.vmem [shape: f32[32,128], index: 2, kind: input, shape index: {}]
  %s3 = inlined_call_operand.hbm [shape: f32[8,128], index: 3, kind: input, shape index: {}]
  %s4 = inlined_call_operand.hbm [shape: f32[128,128], index: 4, kind: input, shape index: {}]
  %s5 = inlined_call_operand.vmem [shape: f32[8,128], index: 5, kind: input, shape index: {}]
  %s6 = inlined_call_operand.hbm [shape: f32[64,128], index: 6, kind: output, shape index: {}]
  %s7 = sld [smem:[#allocation0]]
  $region42: #{tpu_custom_call.1} parent=0
    _
  %s9 = ssub.s32 1, %s7
  %s10 = scalar_select 0, %s9, %s7
  $region1: #{tpu_custom_call.1} parent=0
    #allocation2 [shape = 'u8[4096]{0}', space=vmem, size = 0x1000, scoped, tag = 'input window, operand 3, single buffered']
    #allocation3 [shape = 's32[1]{0}', space=sflag, size = 0x4, scoped, tag = 'scoped memory for tpu_custom_call.1']
    #allocation4 [shape = 's32[1]{0}', space=sflag, size = 0x4, scoped, tag = 'scoped memory for tpu_custom_call.1']
    #allocation5 [shape = 'u8[65536]{0}', space=vmem, size = 0x10000, scoped, tag = 'input window, operand 4, single buffered']
    #allocation6 [shape = 's32[1]{0}', space=sflag, size = 0x4, scoped, tag = 'scoped memory for tpu_custom_call.1']
    #allocation7 [shape = 'u8[32768]{0}', space=vmem, size = 0x8000, scoped, tag = 'output window, operand 0, single buffered']
    %11 = vsyncpa [#allocation3], 0
    %12 = vsyncpa [#allocation6], 0
    %13 = vsyncpa [#allocation4], 0
    // Predicated region
    $region2: #{tpu_custom_call.1} parent=1 // pred_check
      _
    $region3: #{tpu_custom_call.1} parent=1 // pred_check_branch
      %15 = sbr.rel (0) target = $region5
    $region4: #{tpu_custom_call.1} parent=1 // pred_region
      _
    $region5: #{tpu_custom_call.1} parent=1 // pred_fallthru
      _
    // Predicated region
    $region6: #{tpu_custom_call.1} parent=1 // pred_check
      _
    $region7: #{tpu_custom_call.1} parent=1 // pred_check_branch
      %17 = sbr.rel (0) target = $region9
    $region8: #{tpu_custom_call.1} parent=1 // pred_region
      _
    $region9: #{tpu_custom_call.1} parent=1 // pred_fallthru
      _
    // Predicated region
    $region10: #{tpu_custom_call.1} parent=1 // pred_check
      _
    $region11: #{tpu_custom_call.1} parent=1 // pred_check_branch
      %19 = sbr.rel (0) target = $region13
    $region12: #{tpu_custom_call.1} parent=1 // pred_region
      _
    $region13: #{tpu_custom_call.1} parent=1 // pred_fallthru
      _
    // Predicated region
    $region14: #{tpu_custom_call.1} parent=1 // pred_check
      _
    $region15: #{tpu_custom_call.1} parent=1 // pred_check_branch
      %21 = sbr.rel (0) target = $region17
    $region16: #{tpu_custom_call.1} parent=1 // pred_region
      %s23 = ssub.s32 128, 128
      %24 = vsyncadd [#allocation3], %s23
      %s26 = sshll.u32 [#allocation2], 4
      %s27 = int_to_ptr.vmem [resolvable:$true] %s26
      %29 = dma.hbm_to_vmem [thread:$0]  %s3, 128, %s27, [#allocation3]
    $region17: #{tpu_custom_call.1} parent=1 // pred_fallthru
      _
    // Predicated region
    $region18: #{tpu_custom_call.1} parent=1 // pred_check
      _
    $region19: #{tpu_custom_call.1} parent=1 // pred_check_branch
      %31 = sbr.rel (0) target = $region21
    $region20: #{tpu_custom_call.1} parent=1 // pred_region
      %s33 = ssub.s32 2048, 2048
      %34 = vsyncadd [#allocation6], %s33
      %s35 = sshll.u32 [#allocation5], 4
      %s36 = int_to_ptr.vmem [resolvable:$true] %s35
      %41 = dma.hbm_to_vmem [thread:$0]  %s4, 2048, %s36, [#allocation6], 128, 128, 8
    $region21: #{tpu_custom_call.1} parent=1 // pred_fallthru
      _
    // Predicated region
    $region22: #{tpu_custom_call.1} parent=1 // pred_check
      _
    $region23: #{tpu_custom_call.1} parent=1 // pred_check_branch
      %43 = sbr.rel (0) target = $region25
    $region24: #{tpu_custom_call.1} parent=1 // pred_region
      _
    $region25: #{tpu_custom_call.1} parent=1 // pred_fallthru
      _
    // Predicated region
    $region26: #{tpu_custom_call.1} parent=1 // pred_check
      _
    $region27: #{tpu_custom_call.1} parent=1 // pred_check_branch
      %45 = sbr.rel (0) target = $region29
    $region28: #{tpu_custom_call.1} parent=1 // pred_region
      %46 = dma.done [#allocation3], 128
    $region29: #{tpu_custom_call.1} parent=1 // pred_fallthru
      _
    // Predicated region
    $region30: #{tpu_custom_call.1} parent=1 // pred_check
      _
    $region31: #{tpu_custom_call.1} parent=1 // pred_check_branch
      %48 = sbr.rel (0) target = $region33
    $region32: #{tpu_custom_call.1} parent=1 // pred_region
      %49 = dma.done [#allocation6], 2048
    $region33: #{tpu_custom_call.1} parent=1 // pred_fallthru
      _
    %v50 = vld [vmem:[%s1] sm:$0xff]
    %v51 = vld [vmem:[%s1 + $0x8] sm:$0xff]
    %v52 = vld [vmem:[%s1 + $0x10] sm:$0xff]
    %v53 = vld [vmem:[%s1 + $0x18] sm:$0xff]
    %v54 = vld [vmem:[%s1 + $0x20] sm:$0xff]
    %v55 = vld [vmem:[%s1 + $0x28] sm:$0xff]
    %v56 = vld [vmem:[%s1 + $0x30] sm:$0xff]
    %v57 = vld [vmem:[%s1 + $0x38] sm:$0xff]
    %v58 = vld [vmem:[#allocation2] sm:$0x1]
    %v59 = vld [vmem:[#allocation2 + $0x1] sm:$0x1]
    %v60 = vld [vmem:[#allocation2 + $0x2] sm:$0x1]
    %v61 = vld [vmem:[%s5] sm:$0x1]
    %v62 = vld [vmem:[%s5 + $0x1] sm:$0x1]
    %v63 = vld [vmem:[%s5 + $0x2] sm:$0x1]
    %v64 = vld [vmem:[%s0] sm:$0xff]
    %v65 = vld [vmem:[%s0 + $0x8] sm:$0xff]
    %v66 = vld [vmem:[%s0 + $0x10] sm:$0xff]
    %v67 = vld [vmem:[%s0 + $0x18] sm:$0xff]
    %v68 = vld [vmem:[%s0 + $0x20] sm:$0xff]
    %v69 = vld [vmem:[%s0 + $0x28] sm:$0xff]
    %v70 = vld [vmem:[%s0 + $0x30] sm:$0xff]
    %v71 = vld [vmem:[%s0 + $0x38] sm:$0xff]
    %v72 = vld [vmem:[%s2] sm:$0xff]
    %v73 = vld [vmem:[%s2 + $0x8] sm:$0xff]
    %v74 = vld [vmem:[%s2 + $0x10] sm:$0xff]
    %v75 = vld [vmem:[%s2 + $0x18] sm:$0xff]
    %v76 = vlaneseq
    %v77 = vshrl.u32 %v76, 7
    %v78 = vsub.s32 0, %v77
    %v79 = vrot.slane %v58, %v78
    %vm80 = vcmask 261120
    %v82 = vsel %vm80, %v64, 0
    %v85 = vsel %vm80, %v65, 0
    %v88 = vsel %vm80, %v66, 0
    %v91 = vsel %vm80, %v67, 0
    %v94 = vsel %vm80, %v68, 0
    %v97 = vsel %vm80, %v69, 0
    %v100 = vsel %vm80, %v70, 0
    %v103 = vsel %vm80, %v71, 0
    %105 = vmatprep.subr.mxu0 0.0
    %106 = vmatpush1.msra.mxu0 0.0
    %107 = vmatprep.subr.mxu0 0.0
    %108 = vmatpush1.msra.mxu0 0.0
    %109 = vmatprep.subr.mxu0 0.0
    %110 = vmatpush1.msra.mxu0 0.0
    %111 = vmatprep.subr.mxu0 0.0
    %112 = vmatpush1.msra.mxu0 0.0
    %113 = vmatprep.subr.mxu0 0.0
    %114 = vmatpush1.msra.mxu0 0.0
    %115 = vmatprep.subr.mxu0 0.0
    %116 = vmatpush1.msra.mxu0 0.0
    %117 = vmatprep.subr.mxu0 0.0
    %118 = vmatpush1.msra.mxu0 0.0
    %119 = vmatprep.subr.mxu0 0.0
    %120 = vmatpush1.msra.mxu0 0.0
    %121 = vmatprep.subr.mxu0 0.0
    %122 = vmatpush1.msra.mxu0 0.0
    %123 = vmatprep.subr.mxu0 0.0
    %124 = vmatpush1.msra.mxu0 0.0
    %125 = vmatprep.subr.mxu0 0.0
    %126 = vmatpush1.msra.mxu0 0.0
    %127 = vmatprep.subr.mxu0 0.0
    %128 = vmatpush1.msra.mxu0 0.0
    %129 = vmatprep.subr.mxu0 0.0
    %130 = vmatpush1.msra.mxu0 %v75
    %131 = vmatprep.subr.mxu0 0.0
    %132 = vmatpush1.msra.mxu0 %v74
    %133 = vmatprep.subr.mxu0 0.0
    %134 = vmatpush1.msra.mxu0 %v73
    %135 = vmatprep.subr.mxu0 0.0
    %136 = vmatpush1.msra.mxu0 %v72
    %137 = vmatprep.subr.mxu0 0.0
    %138 = vmatpush2.msra.mxu0 0.0
    %139 = vmatprep.subr.mxu0 0.0
    %140 = vmatpush2.msra.mxu0 0.0
    %141 = vmatprep.subr.mxu0 0.0
    %142 = vmatpush2.msra.mxu0 0.0
    %143 = vmatprep.subr.mxu0 0.0
    %144 = vmatpush2.msra.mxu0 0.0
    %145 = vmatprep.subr.mxu0 0.0
    %146 = vmatpush2.msra.mxu0 0.0
    %147 = vmatprep.subr.mxu0 0.0
    %148 = vmatpush2.msra.mxu0 0.0
    %149 = vmatprep.subr.mxu0 0.0
    %150 = vmatpush2.msra.mxu0 0.0
    %151 = vmatprep.subr.mxu0 0.0
    %152 = vmatpush2.msra.mxu0 0.0
    %153 = vmatprep.subr.mxu0 0.0
    %154 = vmatpush2.msra.mxu0 0.0
    %155 = vmatprep.subr.mxu0 0.0
    %156 = vmatpush2.msra.mxu0 0.0
    %157 = vmatprep.subr.mxu0 0.0
    %158 = vmatpush2.msra.mxu0 0.0
    %159 = vmatprep.subr.mxu0 0.0
    %160 = vmatpush2.msra.mxu0 0.0
    %161 = vmatprep.subr.mxu0 0.0
    %162 = vmatpush2.msra.mxu0 0.0
    %163 = vmatprep.subr.mxu0 0.0
    %164 = vmatpush2.msra.mxu0 0.0
    %165 = vmatprep.subr.mxu0 0.0
    %166 = vmatpush2.msra.mxu0 0.0
    %167 = vmatprep.subr.mxu0 0.0
    %168 = vmatpush2.msra.mxu0 0.0
    %169 = vmatprep.mubr.f32.mxu0 0.0
    %170 = vmatmul.mubr.f32.gmra.mxu0 %v82
    %v171 = vpop.f32.mrf.mxu0
    %v172 = vadd.f32 %v79, %v171
    %v173 = vpop.f32.mrf.mxu0
    %174 = vmatprep.mubr.f32.mxu0 0.0
    %175 = vmatmul.mubr.f32.gmra.mxu0 %v85
    %v176 = vpop.f32.mrf.mxu0
    %v177 = vadd.f32 %v79, %v176
    %v178 = vpop.f32.mrf.mxu0
    %179 = vmatprep.mubr.f32.mxu0 0.0
    %180 = vmatmul.mubr.f32.gmra.mxu0 %v88
    %v181 = vpop.f32.mrf.mxu0
    %v182 = vadd.f32 %v79, %v181
    %v183 = vpop.f32.mrf.mxu0
    %184 = vmatprep.mubr.f32.mxu0 0.0
    %185 = vmatmul.mubr.f32.gmra.mxu0 %v91
    %v186 = vpop.f32.mrf.mxu0
    %v187 = vadd.f32 %v79, %v186
    %v188 = vpop.f32.mrf.mxu0
    %189 = vmatprep.mubr.f32.mxu0 0.0
    %190 = vmatmul.mubr.f32.gmra.mxu0 %v94
    %v191 = vpop.f32.mrf.mxu0
    %v192 = vadd.f32 %v79, %v191
    %v193 = vpop.f32.mrf.mxu0
    %194 = vmatprep.mubr.f32.mxu0 0.0
    %195 = vmatmul.mubr.f32.gmra.mxu0 %v97
    %v196 = vpop.f32.mrf.mxu0
    %v197 = vadd.f32 %v79, %v196
    %v198 = vpop.f32.mrf.mxu0
    %199 = vmatprep.mubr.f32.mxu0 0.0
    %200 = vmatmul.mubr.f32.gmra.mxu0 %v100
    %v201 = vpop.f32.mrf.mxu0
    %v202 = vadd.f32 %v79, %v201
    %v203 = vpop.f32.mrf.mxu0
    %204 = vmatprep.mubr.f32.mxu0 0.0
    %205 = vmatmul.mubr.f32.gmra.mxu0 %v103
    %v206 = vpop.f32.mrf.mxu0
    %v207 = vadd.f32 %v79, %v206
    %v208 = vpop.f32.mrf.mxu0
    %209 = vdwg.mxu0
    %v210 = vmul.f32 %v172, 0.1
    %v211 = vmul.f32 %v177, 0.1
    %v212 = vmul.f32 %v182, 0.1
    %v213 = vmul.f32 %v187, 0.1
    %v214 = vmul.f32 %v192, 0.1
    %v215 = vmul.f32 %v197, 0.1
    %v216 = vmul.f32 %v202, 0.1
    %v217 = vmul.f32 %v207, 0.1
    %vm218 = vcmask 523264
    %v220 = vsel %vm218, %v50, 0
    %v223 = vsel %vm218, %v51, 0
    %v226 = vsel %vm218, %v52, 0
    %v229 = vsel %vm218, %v53, 0
    %v232 = vsel %vm218, %v54, 0
    %v235 = vsel %vm218, %v55, 0
    %v238 = vsel %vm218, %v56, 0
    %v241 = vsel %vm218, %v57, 0
    %243 = vmatprep.subr.mxu0 0.0
    %244 = vmatpush1.msra.mxu0 0.0
    %245 = vmatprep.subr.mxu0 0.0
    %246 = vmatpush1.msra.mxu0 0.0
    %247 = vmatprep.subr.mxu0 0.0
    %248 = vmatpush1.msra.mxu0 0.0
    %249 = vmatprep.subr.mxu0 0.0
    %250 = vmatpush1.msra.mxu0 0.0
    %251 = vmatprep.subr.mxu0 0.0
    %252 = vmatpush1.msra.mxu0 0.0
    %253 = vmatprep.subr.mxu0 0.0
    %254 = vmatpush1.msra.mxu0 0.0
    %255 = vmatprep.subr.mxu0 0.0
    %256 = vmatpush1.msra.mxu0 0.0
    %257 = vmatprep.subr.mxu0 0.0
    %258 = vmatpush1.msra.mxu0 0.0
    %259 = vmatprep.subr.mxu0 0.0
    %260 = vmatpush1.msra.mxu0 %v207
    %261 = vmatprep.subr.mxu0 0.0
    %262 = vmatpush1.msra.mxu0 %v202
    %263 = vmatprep.subr.mxu0 0.0
    %264 = vmatpush1.msra.mxu0 %v197
    %265 = vmatprep.subr.mxu0 0.0
    %266 = vmatpush1.msra.mxu0 %v192
    %267 = vmatprep.subr.mxu0 0.0
    %268 = vmatpush1.msra.mxu0 %v187
    %269 = vmatprep.subr.mxu0 0.0
    %270 = vmatpush1.msra.mxu0 %v182
    %271 = vmatprep.subr.mxu0 0.0
    %272 = vmatpush1.msra.mxu0 %v177
    %273 = vmatprep.subr.mxu0 0.0
    %274 = vmatpush1.msra.mxu0 %v172
    %275 = vmatprep.subr.mxu0 0.0
    %276 = vmatpush2.msra.mxu0 0.0
    %277 = vmatprep.subr.mxu0 0.0
    %278 = vmatpush2.msra.mxu0 0.0
    %279 = vmatprep.subr.mxu0 0.0
    %280 = vmatpush2.msra.mxu0 0.0
    %281 = vmatprep.subr.mxu0 0.0
    %282 = vmatpush2.msra.mxu0 0.0
    %283 = vmatprep.subr.mxu0 0.0
    %284 = vmatpush2.msra.mxu0 0.0
    %285 = vmatprep.subr.mxu0 0.0
    %286 = vmatpush2.msra.mxu0 0.0
    %287 = vmatprep.subr.mxu0 0.0
    %288 = vmatpush2.msra.mxu0 0.0
    %289 = vmatprep.subr.mxu0 0.0
    %290 = vmatpush2.msra.mxu0 0.0
    %291 = vmatprep.subr.mxu0 0.0
    %292 = vmatpush2.msra.mxu0 0.0
    %293 = vmatprep.subr.mxu0 0.0
    %294 = vmatpush2.msra.mxu0 0.0
    %295 = vmatprep.subr.mxu0 0.0
    %296 = vmatpush2.msra.mxu0 0.0
    %297 = vmatprep.subr.mxu0 0.0
    %298 = vmatpush2.msra.mxu0 0.0
    %299 = vmatprep.subr.mxu0 0.0
    %300 = vmatpush2.msra.mxu0 0.0
    %301 = vmatprep.subr.mxu0 0.0
    %302 = vmatpush2.msra.mxu0 0.0
    %303 = vmatprep.subr.mxu0 0.0
    %304 = vmatpush2.msra.mxu0 0.0
    %305 = vmatprep.subr.mxu0 0.0
    %306 = vmatpush2.msra.mxu0 0.0
    %307 = vmatprep.mubr.f32.mxu0 0.0
    %308 = vmatmul.mubr.f32.gmra.mxu0 %v220
    %v309 = vpop.f32.mrf.mxu0
    %v310 = vadd.f32 %v210, %v309
    %v311 = vpop.f32.mrf.mxu0
    %312 = vmatprep.mubr.f32.mxu0 0.0
    %313 = vmatmul.mubr.f32.gmra.mxu0 %v223
    %v314 = vpop.f32.mrf.mxu0
    %v315 = vadd.f32 %v211, %v314
    %v316 = vpop.f32.mrf.mxu0
    %317 = vmatprep.mubr.f32.mxu0 0.0
    %318 = vmatmul.mubr.f32.gmra.mxu0 %v226
    %v319 = vpop.f32.mrf.mxu0
    %v320 = vadd.f32 %v212, %v319
    %v321 = vpop.f32.mrf.mxu0
    %322 = vmatprep.mubr.f32.mxu0 0.0
    %323 = vmatmul.mubr.f32.gmra.mxu0 %v229
    %v324 = vpop.f32.mrf.mxu0
    %v325 = vadd.f32 %v213, %v324
    %v326 = vpop.f32.mrf.mxu0
    %327 = vmatprep.mubr.f32.mxu0 0.0
    %328 = vmatmul.mubr.f32.gmra.mxu0 %v232
    %v329 = vpop.f32.mrf.mxu0
    %v330 = vadd.f32 %v214, %v329
    %v331 = vpop.f32.mrf.mxu0
    %332 = vmatprep.mubr.f32.mxu0 0.0
    %333 = vmatmul.mubr.f32.gmra.mxu0 %v235
    %v334 = vpop.f32.mrf.mxu0
    %v335 = vadd.f32 %v215, %v334
    %v336 = vpop.f32.mrf.mxu0
    %337 = vmatprep.mubr.f32.mxu0 0.0
    %338 = vmatmul.mubr.f32.gmra.mxu0 %v238
    %v339 = vpop.f32.mrf.mxu0
    %v340 = vadd.f32 %v216, %v339
    %v341 = vpop.f32.mrf.mxu0
    %342 = vmatprep.mubr.f32.mxu0 0.0
    %343 = vmatmul.mubr.f32.gmra.mxu0 %v241
    %v344 = vpop.f32.mrf.mxu0
    %v345 = vadd.f32 %v217, %v344
    %v346 = vpop.f32.mrf.mxu0
    %347 = vdwg.mxu0
    %348 = vmatprep.subr.mxu0 0.0
    %349 = vmatpush1.msra.mxu0 0.0
    %350 = vmatprep.subr.mxu0 0.0
    %351 = vmatpush1.msra.mxu0 0.0
    %352 = vmatprep.subr.mxu0 0.0
    %353 = vmatpush1.msra.mxu0 0.0
    %354 = vmatprep.subr.mxu0 0.0
    %355 = vmatpush1.msra.mxu0 0.0
    %356 = vmatprep.subr.mxu0 0.0
    %357 = vmatpush1.msra.mxu0 0.0
    %358 = vmatprep.subr.mxu0 0.0
    %359 = vmatpush1.msra.mxu0 0.0
    %360 = vmatprep.subr.mxu0 0.0
    %361 = vmatpush1.msra.mxu0 0.0
    %362 = vmatprep.subr.mxu0 0.0
    %363 = vmatpush1.msra.mxu0 0.0
    %364 = vmatprep.subr.mxu0 0.0
    %365 = vmatpush1.msra.mxu0 %v345
    %366 = vmatprep.subr.mxu0 0.0
    %367 = vmatpush1.msra.mxu0 %v340
    %368 = vmatprep.subr.mxu0 0.0
    %369 = vmatpush1.msra.mxu0 %v335
    %370 = vmatprep.subr.mxu0 0.0
    %371 = vmatpush1.msra.mxu0 %v330
    %372 = vmatprep.subr.mxu0 0.0
    %373 = vmatpush1.msra.mxu0 %v325
    %374 = vmatprep.subr.mxu0 0.0
    %375 = vmatpush1.msra.mxu0 %v320
    %376 = vmatprep.subr.mxu0 0.0
    %377 = vmatpush1.msra.mxu0 %v315
    %378 = vmatprep.subr.mxu0 0.0
    %379 = vmatpush1.msra.mxu0 %v310
    %380 = vmatprep.subr.mxu0 0.0
    %381 = vmatpush2.msra.mxu0 0.0
    %382 = vmatprep.subr.mxu0 0.0
    %383 = vmatpush2.msra.mxu0 0.0
    %384 = vmatprep.subr.mxu0 0.0
    %385 = vmatpush2.msra.mxu0 0.0
    %386 = vmatprep.subr.mxu0 0.0
    %387 = vmatpush2.msra.mxu0 0.0
    %388 = vmatprep.subr.mxu0 0.0
    %389 = vmatpush2.msra.mxu0 0.0
    %390 = vmatprep.subr.mxu0 0.0
    %391 = vmatpush2.msra.mxu0 0.0
    %392 = vmatprep.subr.mxu0 0.0
    %393 = vmatpush2.msra.mxu0 0.0
    %394 = vmatprep.subr.mxu0 0.0
    %395 = vmatpush2.msra.mxu0 0.0
    %396 = vmatprep.subr.mxu0 0.0
    %397 = vmatpush2.msra.mxu0 0.0
    %398 = vmatprep.subr.mxu0 0.0
    %399 = vmatpush2.msra.mxu0 0.0
    %400 = vmatprep.subr.mxu0 0.0
    %401 = vmatpush2.msra.mxu0 0.0
    %402 = vmatprep.subr.mxu0 0.0
    %403 = vmatpush2.msra.mxu0 0.0
    %404 = vmatprep.subr.mxu0 0.0
    %405 = vmatpush2.msra.mxu0 0.0
    %406 = vmatprep.subr.mxu0 0.0
    %407 = vmatpush2.msra.mxu0 0.0
    %408 = vmatprep.subr.mxu0 0.0
    %409 = vmatpush2.msra.mxu0 0.0
    %410 = vmatprep.subr.mxu0 0.0
    %411 = vmatpush2.msra.mxu0 0.0
    %412 = vmatprep.mubr.f32.mxu0 0.0
    %413 = vmatmul.mubr.f32.gmra.mxu0 %v220
    %v414 = vpop.f32.mrf.mxu0
    %v415 = vadd.f32 %v210, %v414
    %v416 = vpop.f32.mrf.mxu0
    %417 = vmatprep.mubr.f32.mxu0 0.0
    %418 = vmatmul.mubr.f32.gmra.mxu0 %v223
    %v419 = vpop.f32.mrf.mxu0
    %v420 = vadd.f32 %v211, %v419
    %v421 = vpop.f32.mrf.mxu0
    %422 = vmatprep.mubr.f32.mxu0 0.0
    %423 = vmatmul.mubr.f32.gmra.mxu0 %v226
    %v424 = vpop.f32.mrf.mxu0
    %v425 = vadd.f32 %v212, %v424
    %v426 = vpop.f32.mrf.mxu0
    %427 = vmatprep.mubr.f32.mxu0 0.0
    %428 = vmatmul.mubr.f32.gmra.mxu0 %v229
    %v429 = vpop.f32.mrf.mxu0
    %v430 = vadd.f32 %v213, %v429
    %v431 = vpop.f32.mrf.mxu0
    %432 = vmatprep.mubr.f32.mxu0 0.0
    %433 = vmatmul.mubr.f32.gmra.mxu0 %v232
    %v434 = vpop.f32.mrf.mxu0
    %v435 = vadd.f32 %v214, %v434
    %v436 = vpop.f32.mrf.mxu0
    %437 = vmatprep.mubr.f32.mxu0 0.0
    %438 = vmatmul.mubr.f32.gmra.mxu0 %v235
    %v439 = vpop.f32.mrf.mxu0
    %v440 = vadd.f32 %v215, %v439
    %v441 = vpop.f32.mrf.mxu0
    %442 = vmatprep.mubr.f32.mxu0 0.0
    %443 = vmatmul.mubr.f32.gmra.mxu0 %v238
    %v444 = vpop.f32.mrf.mxu0
    %v445 = vadd.f32 %v216, %v444
    %v446 = vpop.f32.mrf.mxu0
    %447 = vmatprep.mubr.f32.mxu0 0.0
    %448 = vmatmul.mubr.f32.gmra.mxu0 %v241
    %v449 = vpop.f32.mrf.mxu0
    %v450 = vadd.f32 %v217, %v449
    %v451 = vpop.f32.mrf.mxu0
    %452 = vdwg.mxu0
    %453 = vmatprep.subr.mxu0 0.0
    %454 = vmatpush1.msra.mxu0 0.0
    %455 = vmatprep.subr.mxu0 0.0
    %456 = vmatpush1.msra.mxu0 0.0
    %457 = vmatprep.subr.mxu0 0.0
    %458 = vmatpush1.msra.mxu0 0.0
    %459 = vmatprep.subr.mxu0 0.0
    %460 = vmatpush1.msra.mxu0 0.0
    %461 = vmatprep.subr.mxu0 0.0
    %462 = vmatpush1.msra.mxu0 0.0
    %463 = vmatprep.subr.mxu0 0.0
    %464 = vmatpush1.msra.mxu0 0.0
    %465 = vmatprep.subr.mxu0 0.0
    %466 = vmatpush1.msra.mxu0 0.0
    %467 = vmatprep.subr.mxu0 0.0
    %468 = vmatpush1.msra.mxu0 0.0
    %469 = vmatprep.subr.mxu0 0.0
    %470 = vmatpush1.msra.mxu0 %v450
    %471 = vmatprep.subr.mxu0 0.0
    %472 = vmatpush1.msra.mxu0 %v445
    %473 = vmatprep.subr.mxu0 0.0
    %474 = vmatpush1.msra.mxu0 %v440
    %475 = vmatprep.subr.mxu0 0.0
    %476 = vmatpush1.msra.mxu0 %v435
    %477 = vmatprep.subr.mxu0 0.0
    %478 = vmatpush1.msra.mxu0 %v430
    %479 = vmatprep.subr.mxu0 0.0
    %480 = vmatpush1.msra.mxu0 %v425
    %481 = vmatprep.subr.mxu0 0.0
    %482 = vmatpush1.msra.mxu0 %v420
    %483 = vmatprep.subr.mxu0 0.0
    %484 = vmatpush1.msra.mxu0 %v415
    %485 = vmatprep.subr.mxu0 0.0
    %486 = vmatpush2.msra.mxu0 0.0
    %487 = vmatprep.subr.mxu0 0.0
    %488 = vmatpush2.msra.mxu0 0.0
    %489 = vmatprep.subr.mxu0 0.0
    %490 = vmatpush2.msra.mxu0 0.0
    %491 = vmatprep.subr.mxu0 0.0
    %492 = vmatpush2.msra.mxu0 0.0
    %493 = vmatprep.subr.mxu0 0.0
    %494 = vmatpush2.msra.mxu0 0.0
    %495 = vmatprep.subr.mxu0 0.0
    %496 = vmatpush2.msra.mxu0 0.0
    %497 = vmatprep.subr.mxu0 0.0
    %498 = vmatpush2.msra.mxu0 0.0
    %499 = vmatprep.subr.mxu0 0.0
    %500 = vmatpush2.msra.mxu0 0.0
    %501 = vmatprep.subr.mxu0 0.0
    %502 = vmatpush2.msra.mxu0 0.0
    %503 = vmatprep.subr.mxu0 0.0
    %504 = vmatpush2.msra.mxu0 0.0
    %505 = vmatprep.subr.mxu0 0.0
    %506 = vmatpush2.msra.mxu0 0.0
    %507 = vmatprep.subr.mxu0 0.0
    %508 = vmatpush2.msra.mxu0 0.0
    %509 = vmatprep.subr.mxu0 0.0
    %510 = vmatpush2.msra.mxu0 0.0
    %511 = vmatprep.subr.mxu0 0.0
    %512 = vmatpush2.msra.mxu0 0.0
    %513 = vmatprep.subr.mxu0 0.0
    %514 = vmatpush2.msra.mxu0 0.0
    %515 = vmatprep.subr.mxu0 0.0
    %516 = vmatpush2.msra.mxu0 0.0
    %517 = vmatprep.mubr.f32.mxu0 0.0
    %518 = vmatmul.mubr.f32.gmra.mxu0 %v220
    %v519 = vpop.f32.mrf.mxu0
    %v520 = vadd.f32 %v210, %v519
    %v521 = vpop.f32.mrf.mxu0
    %522 = vmatprep.mubr.f32.mxu0 0.0
    %523 = vmatmul.mubr.f32.gmra.mxu0 %v223
    %v524 = vpop.f32.mrf.mxu0
    %v525 = vadd.f32 %v211, %v524
    %v526 = vpop.f32.mrf.mxu0
    %527 = vmatprep.mubr.f32.mxu0 0.0
    %528 = vmatmul.mubr.f32.gmra.mxu0 %v226
    %v529 = vpop.f32.mrf.mxu0
    %v530 = vadd.f32 %v212, %v529
    %v531 = vpop.f32.mrf.mxu0
    %532 = vmatprep.mubr.f32.mxu0 0.0
    %533 = vmatmul.mubr.f32.gmra.mxu0 %v229
    %v534 = vpop.f32.mrf.mxu0
    %v535 = vadd.f32 %v213, %v534
    %v536 = vpop.f32.mrf.mxu0
    %537 = vmatprep.mubr.f32.mxu0 0.0
    %538 = vmatmul.mubr.f32.gmra.mxu0 %v232
    %v539 = vpop.f32.mrf.mxu0
    %v540 = vadd.f32 %v214, %v539
    %v541 = vpop.f32.mrf.mxu0
    %542 = vmatprep.mubr.f32.mxu0 0.0
    %543 = vmatmul.mubr.f32.gmra.mxu0 %v235
    %v544 = vpop.f32.mrf.mxu0
    %v545 = vadd.f32 %v215, %v544
    %v546 = vpop.f32.mrf.mxu0
    %547 = vmatprep.mubr.f32.mxu0 0.0
    %548 = vmatmul.mubr.f32.gmra.mxu0 %v238
    %v549 = vpop.f32.mrf.mxu0
    %v550 = vadd.f32 %v216, %v549
    %v551 = vpop.f32.mrf.mxu0
    %552 = vmatprep.mubr.f32.mxu0 0.0
    %553 = vmatmul.mubr.f32.gmra.mxu0 %v241
    %v554 = vpop.f32.mrf.mxu0
    %v555 = vadd.f32 %v217, %v554
    %v556 = vpop.f32.mrf.mxu0
    %557 = vdwg.mxu0
    %558 = vmatprep.subr.mxu0 0.0
    %559 = vmatpush1.msra.mxu0 0.0
    %560 = vmatprep.subr.mxu0 0.0
    %561 = vmatpush1.msra.mxu0 0.0
    %562 = vmatprep.subr.mxu0 0.0
    %563 = vmatpush1.msra.mxu0 0.0
    %564 = vmatprep.subr.mxu0 0.0
    %565 = vmatpush1.msra.mxu0 0.0
    %566 = vmatprep.subr.mxu0 0.0
    %567 = vmatpush1.msra.mxu0 0.0
    %568 = vmatprep.subr.mxu0 0.0
    %569 = vmatpush1.msra.mxu0 0.0
    %570 = vmatprep.subr.mxu0 0.0
    %571 = vmatpush1.msra.mxu0 0.0
    %572 = vmatprep.subr.mxu0 0.0
    %573 = vmatpush1.msra.mxu0 0.0
    %574 = vmatprep.subr.mxu0 0.0
    %575 = vmatpush1.msra.mxu0 %v555
    %576 = vmatprep.subr.mxu0 0.0
    %577 = vmatpush1.msra.mxu0 %v550
    %578 = vmatprep.subr.mxu0 0.0
    %579 = vmatpush1.msra.mxu0 %v545
    %580 = vmatprep.subr.mxu0 0.0
    %581 = vmatpush1.msra.mxu0 %v540
    %582 = vmatprep.subr.mxu0 0.0
    %583 = vmatpush1.msra.mxu0 %v535
    %584 = vmatprep.subr.mxu0 0.0
    %585 = vmatpush1.msra.mxu0 %v530
    %586 = vmatprep.subr.mxu0 0.0
    %587 = vmatpush1.msra.mxu0 %v525
    %588 = vmatprep.subr.mxu0 0.0
    %589 = vmatpush1.msra.mxu0 %v520
    %590 = vmatprep.subr.mxu0 0.0
    %591 = vmatpush2.msra.mxu0 0.0
    %592 = vmatprep.subr.mxu0 0.0
    %593 = vmatpush2.msra.mxu0 0.0
    %594 = vmatprep.subr.mxu0 0.0
    %595 = vmatpush2.msra.mxu0 0.0
    %596 = vmatprep.subr.mxu0 0.0
    %597 = vmatpush2.msra.mxu0 0.0
    %598 = vmatprep.subr.mxu0 0.0
    %599 = vmatpush2.msra.mxu0 0.0
    %600 = vmatprep.subr.mxu0 0.0
    %601 = vmatpush2.msra.mxu0 0.0
    %602 = vmatprep.subr.mxu0 0.0
    %603 = vmatpush2.msra.mxu0 0.0
    %604 = vmatprep.subr.mxu0 0.0
    %605 = vmatpush2.msra.mxu0 0.0
    %606 = vmatprep.subr.mxu0 0.0
    %607 = vmatpush2.msra.mxu0 0.0
    %608 = vmatprep.subr.mxu0 0.0
    %609 = vmatpush2.msra.mxu0 0.0
    %610 = vmatprep.subr.mxu0 0.0
    %611 = vmatpush2.msra.mxu0 0.0
    %612 = vmatprep.subr.mxu0 0.0
    %613 = vmatpush2.msra.mxu0 0.0
    %614 = vmatprep.subr.mxu0 0.0
    %615 = vmatpush2.msra.mxu0 0.0
    %616 = vmatprep.subr.mxu0 0.0
    %617 = vmatpush2.msra.mxu0 0.0
    %618 = vmatprep.subr.mxu0 0.0
    %619 = vmatpush2.msra.mxu0 0.0
    %620 = vmatprep.subr.mxu0 0.0
    %621 = vmatpush2.msra.mxu0 0.0
    %622 = vmatprep.mubr.f32.mxu0 0.0
    %623 = vmatmul.mubr.f32.gmra.mxu0 %v220
    %v624 = vpop.f32.mrf.mxu0
    %v625 = vadd.f32 %v210, %v624
    %v626 = vpop.f32.mrf.mxu0
    %627 = vmatprep.mubr.f32.mxu0 0.0
    %628 = vmatmul.mubr.f32.gmra.mxu0 %v223
    %v629 = vpop.f32.mrf.mxu0
    %v630 = vadd.f32 %v211, %v629
    %v631 = vpop.f32.mrf.mxu0
    %632 = vmatprep.mubr.f32.mxu0 0.0
    %633 = vmatmul.mubr.f32.gmra.mxu0 %v226
    %v634 = vpop.f32.mrf.mxu0
    %v635 = vadd.f32 %v212, %v634
    %v636 = vpop.f32.mrf.mxu0
    %637 = vmatprep.mubr.f32.mxu0 0.0
    %638 = vmatmul.mubr.f32.gmra.mxu0 %v229
    %v639 = vpop.f32.mrf.mxu0
    %v640 = vadd.f32 %v213, %v639
    %v641 = vpop.f32.mrf.mxu0
    %642 = vmatprep.mubr.f32.mxu0 0.0
    %643 = vmatmul.mubr.f32.gmra.mxu0 %v232
    %v644 = vpop.f32.mrf.mxu0
    %v645 = vadd.f32 %v214, %v644
    %v646 = vpop.f32.mrf.mxu0
    %647 = vmatprep.mubr.f32.mxu0 0.0
    %648 = vmatmul.mubr.f32.gmra.mxu0 %v235
    %v649 = vpop.f32.mrf.mxu0
    %v650 = vadd.f32 %v215, %v649
    %v651 = vpop.f32.mrf.mxu0
    %652 = vmatprep.mubr.f32.mxu0 0.0
    %653 = vmatmul.mubr.f32.gmra.mxu0 %v238
    %v654 = vpop.f32.mrf.mxu0
    %v655 = vadd.f32 %v216, %v654
    %v656 = vpop.f32.mrf.mxu0
    %657 = vmatprep.mubr.f32.mxu0 0.0
    %658 = vmatmul.mubr.f32.gmra.mxu0 %v241
    %v659 = vpop.f32.mrf.mxu0
    %v660 = vadd.f32 %v217, %v659
    %v661 = vpop.f32.mrf.mxu0
    %662 = vdwg.mxu0
    %663 = vmatprep.subr.mxu0 0.0
    %664 = vmatpush1.msra.mxu0 0.0
    %665 = vmatprep.subr.mxu0 0.0
    %666 = vmatpush1.msra.mxu0 0.0
    %667 = vmatprep.subr.mxu0 0.0
    %668 = vmatpush1.msra.mxu0 0.0
    %669 = vmatprep.subr.mxu0 0.0
    %670 = vmatpush1.msra.mxu0 0.0
    %671 = vmatprep.subr.mxu0 0.0
    %672 = vmatpush1.msra.mxu0 0.0
    %673 = vmatprep.subr.mxu0 0.0
    %674 = vmatpush1.msra.mxu0 0.0
    %675 = vmatprep.subr.mxu0 0.0
    %676 = vmatpush1.msra.mxu0 0.0
    %677 = vmatprep.subr.mxu0 0.0
    %678 = vmatpush1.msra.mxu0 0.0
    %679 = vmatprep.subr.mxu0 0.0
    %680 = vmatpush1.msra.mxu0 %v660
    %681 = vmatprep.subr.mxu0 0.0
    %682 = vmatpush1.msra.mxu0 %v655
    %683 = vmatprep.subr.mxu0 0.0
    %684 = vmatpush1.msra.mxu0 %v650
    %685 = vmatprep.subr.mxu0 0.0
    %686 = vmatpush1.msra.mxu0 %v645
    %687 = vmatprep.subr.mxu0 0.0
    %688 = vmatpush1.msra.mxu0 %v640
    %689 = vmatprep.subr.mxu0 0.0
    %690 = vmatpush1.msra.mxu0 %v635
    %691 = vmatprep.subr.mxu0 0.0
    %692 = vmatpush1.msra.mxu0 %v630
    %693 = vmatprep.subr.mxu0 0.0
    %694 = vmatpush1.msra.mxu0 %v625
    %695 = vmatprep.subr.mxu0 0.0
    %696 = vmatpush2.msra.mxu0 0.0
    %697 = vmatprep.subr.mxu0 0.0
    %698 = vmatpush2.msra.mxu0 0.0
    %699 = vmatprep.subr.mxu0 0.0
    %700 = vmatpush2.msra.mxu0 0.0
    %701 = vmatprep.subr.mxu0 0.0
    %702 = vmatpush2.msra.mxu0 0.0
    %703 = vmatprep.subr.mxu0 0.0
    %704 = vmatpush2.msra.mxu0 0.0
    %705 = vmatprep.subr.mxu0 0.0
    %706 = vmatpush2.msra.mxu0 0.0
    %707 = vmatprep.subr.mxu0 0.0
    %708 = vmatpush2.msra.mxu0 0.0
    %709 = vmatprep.subr.mxu0 0.0
    %710 = vmatpush2.msra.mxu0 0.0
    %711 = vmatprep.subr.mxu0 0.0
    %712 = vmatpush2.msra.mxu0 0.0
    %713 = vmatprep.subr.mxu0 0.0
    %714 = vmatpush2.msra.mxu0 0.0
    %715 = vmatprep.subr.mxu0 0.0
    %716 = vmatpush2.msra.mxu0 0.0
    %717 = vmatprep.subr.mxu0 0.0
    %718 = vmatpush2.msra.mxu0 0.0
    %719 = vmatprep.subr.mxu0 0.0
    %720 = vmatpush2.msra.mxu0 0.0
    %721 = vmatprep.subr.mxu0 0.0
    %722 = vmatpush2.msra.mxu0 0.0
    %723 = vmatprep.subr.mxu0 0.0
    %724 = vmatpush2.msra.mxu0 0.0
    %725 = vmatprep.subr.mxu0 0.0
    %726 = vmatpush2.msra.mxu0 0.0
    %727 = vmatprep.mubr.f32.mxu0 0.0
    %728 = vmatmul.mubr.f32.gmra.mxu0 %v220
    %v729 = vpop.f32.mrf.mxu0
    %v730 = vadd.f32 %v210, %v729
    %v731 = vpop.f32.mrf.mxu0
    %732 = vmatprep.mubr.f32.mxu0 0.0
    %733 = vmatmul.mubr.f32.gmra.mxu0 %v223
    %v734 = vpop.f32.mrf.mxu0
    %v735 = vadd.f32 %v211, %v734
    %v736 = vpop.f32.mrf.mxu0
    %737 = vmatprep.mubr.f32.mxu0 0.0
    %738 = vmatmul.mubr.f32.gmra.mxu0 %v226
    %v739 = vpop.f32.mrf.mxu0
    %v740 = vadd.f32 %v212, %v739
    %v741 = vpop.f32.mrf.mxu0
    %742 = vmatprep.mubr.f32.mxu0 0.0
    %743 = vmatmul.mubr.f32.gmra.mxu0 %v229
    %v744 = vpop.f32.mrf.mxu0
    %v745 = vadd.f32 %v213, %v744
    %v746 = vpop.f32.mrf.mxu0
    %747 = vmatprep.mubr.f32.mxu0 0.0
    %748 = vmatmul.mubr.f32.gmra.mxu0 %v232
    %v749 = vpop.f32.mrf.mxu0
    %v750 = vadd.f32 %v214, %v749
    %v751 = vpop.f32.mrf.mxu0
    %752 = vmatprep.mubr.f32.mxu0 0.0
    %753 = vmatmul.mubr.f32.gmra.mxu0 %v235
    %v754 = vpop.f32.mrf.mxu0
    %v755 = vadd.f32 %v215, %v754
    %v756 = vpop.f32.mrf.mxu0
    %757 = vmatprep.mubr.f32.mxu0 0.0
    %758 = vmatmul.mubr.f32.gmra.mxu0 %v238
    %v759 = vpop.f32.mrf.mxu0
    %v760 = vadd.f32 %v216, %v759
    %v761 = vpop.f32.mrf.mxu0
    %762 = vmatprep.mubr.f32.mxu0 0.0
    %763 = vmatmul.mubr.f32.gmra.mxu0 %v241
    %v764 = vpop.f32.mrf.mxu0
    %v765 = vadd.f32 %v217, %v764
    %v766 = vpop.f32.mrf.mxu0
    %767 = vdwg.mxu0
    %768 = vmatprep.subr.mxu0 0.0
    %769 = vmatpush1.msra.mxu0 0.0
    %770 = vmatprep.subr.mxu0 0.0
    %771 = vmatpush1.msra.mxu0 0.0
    %772 = vmatprep.subr.mxu0 0.0
    %773 = vmatpush1.msra.mxu0 0.0
    %774 = vmatprep.subr.mxu0 0.0
    %775 = vmatpush1.msra.mxu0 0.0
    %776 = vmatprep.subr.mxu0 0.0
    %777 = vmatpush1.msra.mxu0 0.0
    %778 = vmatprep.subr.mxu0 0.0
    %779 = vmatpush1.msra.mxu0 0.0
    %780 = vmatprep.subr.mxu0 0.0
    %781 = vmatpush1.msra.mxu0 0.0
    %782 = vmatprep.subr.mxu0 0.0
    %783 = vmatpush1.msra.mxu0 0.0
    %784 = vmatprep.subr.mxu0 0.0
    %785 = vmatpush1.msra.mxu0 %v765
    %786 = vmatprep.subr.mxu0 0.0
    %787 = vmatpush1.msra.mxu0 %v760
    %788 = vmatprep.subr.mxu0 0.0
    %789 = vmatpush1.msra.mxu0 %v755
    %790 = vmatprep.subr.mxu0 0.0
    %791 = vmatpush1.msra.mxu0 %v750
    %792 = vmatprep.subr.mxu0 0.0
    %793 = vmatpush1.msra.mxu0 %v745
    %794 = vmatprep.subr.mxu0 0.0
    %795 = vmatpush1.msra.mxu0 %v740
    %796 = vmatprep.subr.mxu0 0.0
    %797 = vmatpush1.msra.mxu0 %v735
    %798 = vmatprep.subr.mxu0 0.0
    %799 = vmatpush1.msra.mxu0 %v730
    %800 = vmatprep.subr.mxu0 0.0
    %801 = vmatpush2.msra.mxu0 0.0
    %802 = vmatprep.subr.mxu0 0.0
    %803 = vmatpush2.msra.mxu0 0.0
    %804 = vmatprep.subr.mxu0 0.0
    %805 = vmatpush2.msra.mxu0 0.0
    %806 = vmatprep.subr.mxu0 0.0
    %807 = vmatpush2.msra.mxu0 0.0
    %808 = vmatprep.subr.mxu0 0.0
    %809 = vmatpush2.msra.mxu0 0.0
    %810 = vmatprep.subr.mxu0 0.0
    %811 = vmatpush2.msra.mxu0 0.0
    %812 = vmatprep.subr.mxu0 0.0
    %813 = vmatpush2.msra.mxu0 0.0
    %814 = vmatprep.subr.mxu0 0.0
    %815 = vmatpush2.msra.mxu0 0.0
    %816 = vmatprep.subr.mxu0 0.0
    %817 = vmatpush2.msra.mxu0 0.0
    %818 = vmatprep.subr.mxu0 0.0
    %819 = vmatpush2.msra.mxu0 0.0
    %820 = vmatprep.subr.mxu0 0.0
    %821 = vmatpush2.msra.mxu0 0.0
    %822 = vmatprep.subr.mxu0 0.0
    %823 = vmatpush2.msra.mxu0 0.0
    %824 = vmatprep.subr.mxu0 0.0
    %825 = vmatpush2.msra.mxu0 0.0
    %826 = vmatprep.subr.mxu0 0.0
    %827 = vmatpush2.msra.mxu0 0.0
    %828 = vmatprep.subr.mxu0 0.0
    %829 = vmatpush2.msra.mxu0 0.0
    %830 = vmatprep.subr.mxu0 0.0
    %831 = vmatpush2.msra.mxu0 0.0
    %832 = vmatprep.mubr.f32.mxu0 0.0
    %833 = vmatmul.mubr.f32.gmra.mxu0 %v220
    %v834 = vpop.f32.mrf.mxu0
    %v835 = vadd.f32 %v210, %v834
    %v836 = vpop.f32.mrf.mxu0
    %837 = vmatprep.mubr.f32.mxu0 0.0
    %838 = vmatmul.mubr.f32.gmra.mxu0 %v223
    %v839 = vpop.f32.mrf.mxu0
    %v840 = vadd.f32 %v211, %v839
    %v841 = vpop.f32.mrf.mxu0
    %842 = vmatprep.mubr.f32.mxu0 0.0
    %843 = vmatmul.mubr.f32.gmra.mxu0 %v226
    %v844 = vpop.f32.mrf.mxu0
    %v845 = vadd.f32 %v212, %v844
    %v846 = vpop.f32.mrf.mxu0
    %847 = vmatprep.mubr.f32.mxu0 0.0
    %848 = vmatmul.mubr.f32.gmra.mxu0 %v229
    %v849 = vpop.f32.mrf.mxu0
    %v850 = vadd.f32 %v213, %v849
    %v851 = vpop.f32.mrf.mxu0
    %852 = vmatprep.mubr.f32.mxu0 0.0
    %853 = vmatmul.mubr.f32.gmra.mxu0 %v232
    %v854 = vpop.f32.mrf.mxu0
    %v855 = vadd.f32 %v214, %v854
    %v856 = vpop.f32.mrf.mxu0
    %857 = vmatprep.mubr.f32.mxu0 0.0
    %858 = vmatmul.mubr.f32.gmra.mxu0 %v235
    %v859 = vpop.f32.mrf.mxu0
    %v860 = vadd.f32 %v215, %v859
    %v861 = vpop.f32.mrf.mxu0
    %862 = vmatprep.mubr.f32.mxu0 0.0
    %863 = vmatmul.mubr.f32.gmra.mxu0 %v238
    %v864 = vpop.f32.mrf.mxu0
    %v865 = vadd.f32 %v216, %v864
    %v866 = vpop.f32.mrf.mxu0
    %867 = vmatprep.mubr.f32.mxu0 0.0
    %868 = vmatmul.mubr.f32.gmra.mxu0 %v241
    %v869 = vpop.f32.mrf.mxu0
    %v870 = vadd.f32 %v217, %v869
    %v871 = vpop.f32.mrf.mxu0
    %872 = vdwg.mxu0
    %873 = vmatprep.subr.mxu0 0.0
    %874 = vmatpush1.msra.mxu0 0.0
    %875 = vmatprep.subr.mxu0 0.0
    %876 = vmatpush1.msra.mxu0 0.0
    %877 = vmatprep.subr.mxu0 0.0
    %878 = vmatpush1.msra.mxu0 0.0
    %879 = vmatprep.subr.mxu0 0.0
    %880 = vmatpush1.msra.mxu0 0.0
    %881 = vmatprep.subr.mxu0 0.0
    %882 = vmatpush1.msra.mxu0 0.0
    %883 = vmatprep.subr.mxu0 0.0
    %884 = vmatpush1.msra.mxu0 0.0
    %885 = vmatprep.subr.mxu0 0.0
    %886 = vmatpush1.msra.mxu0 0.0
    %887 = vmatprep.subr.mxu0 0.0
    %888 = vmatpush1.msra.mxu0 0.0
    %889 = vmatprep.subr.mxu0 0.0
    %890 = vmatpush1.msra.mxu0 %v870
    %891 = vmatprep.subr.mxu0 0.0
    %892 = vmatpush1.msra.mxu0 %v865
    %893 = vmatprep.subr.mxu0 0.0
    %894 = vmatpush1.msra.mxu0 %v860
    %895 = vmatprep.subr.mxu0 0.0
    %896 = vmatpush1.msra.mxu0 %v855
    %897 = vmatprep.subr.mxu0 0.0
    %898 = vmatpush1.msra.mxu0 %v850
    %899 = vmatprep.subr.mxu0 0.0
    %900 = vmatpush1.msra.mxu0 %v845
    %901 = vmatprep.subr.mxu0 0.0
    %902 = vmatpush1.msra.mxu0 %v840
    %903 = vmatprep.subr.mxu0 0.0
    %904 = vmatpush1.msra.mxu0 %v835
    %905 = vmatprep.subr.mxu0 0.0
    %906 = vmatpush2.msra.mxu0 0.0
    %907 = vmatprep.subr.mxu0 0.0
    %908 = vmatpush2.msra.mxu0 0.0
    %909 = vmatprep.subr.mxu0 0.0
    %910 = vmatpush2.msra.mxu0 0.0
    %911 = vmatprep.subr.mxu0 0.0
    %912 = vmatpush2.msra.mxu0 0.0
    %913 = vmatprep.subr.mxu0 0.0
    %914 = vmatpush2.msra.mxu0 0.0
    %915 = vmatprep.subr.mxu0 0.0
    %916 = vmatpush2.msra.mxu0 0.0
    %917 = vmatprep.subr.mxu0 0.0
    %918 = vmatpush2.msra.mxu0 0.0
    %919 = vmatprep.subr.mxu0 0.0
    %920 = vmatpush2.msra.mxu0 0.0
    %921 = vmatprep.subr.mxu0 0.0
    %922 = vmatpush2.msra.mxu0 0.0
    %923 = vmatprep.subr.mxu0 0.0
    %924 = vmatpush2.msra.mxu0 0.0
    %925 = vmatprep.subr.mxu0 0.0
    %926 = vmatpush2.msra.mxu0 0.0
    %927 = vmatprep.subr.mxu0 0.0
    %928 = vmatpush2.msra.mxu0 0.0
    %929 = vmatprep.subr.mxu0 0.0
    %930 = vmatpush2.msra.mxu0 0.0
    %931 = vmatprep.subr.mxu0 0.0
    %932 = vmatpush2.msra.mxu0 0.0
    %933 = vmatprep.subr.mxu0 0.0
    %934 = vmatpush2.msra.mxu0 0.0
    %935 = vmatprep.subr.mxu0 0.0
    %936 = vmatpush2.msra.mxu0 0.0
    %937 = vmatprep.mubr.f32.mxu0 0.0
    %938 = vmatmul.mubr.f32.gmra.mxu0 %v220
    %v939 = vpop.f32.mrf.mxu0
    %v940 = vadd.f32 %v210, %v939
    %v941 = vpop.f32.mrf.mxu0
    %942 = vmatprep.mubr.f32.mxu0 0.0
    %943 = vmatmul.mubr.f32.gmra.mxu0 %v223
    %v944 = vpop.f32.mrf.mxu0
    %v945 = vadd.f32 %v211, %v944
    %v946 = vpop.f32.mrf.mxu0
    %947 = vmatprep.mubr.f32.mxu0 0.0
    %948 = vmatmul.mubr.f32.gmra.mxu0 %v226
    %v949 = vpop.f32.mrf.mxu0
    %v950 = vadd.f32 %v212, %v949
    %v951 = vpop.f32.mrf.mxu0
    %952 = vmatprep.mubr.f32.mxu0 0.0
    %953 = vmatmul.mubr.f32.gmra.mxu0 %v229
    %v954 = vpop.f32.mrf.mxu0
    %v955 = vadd.f32 %v213, %v954
    %v956 = vpop.f32.mrf.mxu0
    %957 = vmatprep.mubr.f32.mxu0 0.0
    %958 = vmatmul.mubr.f32.gmra.mxu0 %v232
    %v959 = vpop.f32.mrf.mxu0
    %v960 = vadd.f32 %v214, %v959
    %v961 = vpop.f32.mrf.mxu0
    %962 = vmatprep.mubr.f32.mxu0 0.0
    %963 = vmatmul.mubr.f32.gmra.mxu0 %v235
    %v964 = vpop.f32.mrf.mxu0
    %v965 = vadd.f32 %v215, %v964
    %v966 = vpop.f32.mrf.mxu0
    %967 = vmatprep.mubr.f32.mxu0 0.0
    %968 = vmatmul.mubr.f32.gmra.mxu0 %v238
    %v969 = vpop.f32.mrf.mxu0
    %v970 = vadd.f32 %v216, %v969
    %v971 = vpop.f32.mrf.mxu0
    %972 = vmatprep.mubr.f32.mxu0 0.0
    %973 = vmatmul.mubr.f32.gmra.mxu0 %v241
    %v974 = vpop.f32.mrf.mxu0
    %v975 = vadd.f32 %v217, %v974
    %v976 = vpop.f32.mrf.mxu0
    %977 = vdwg.mxu0
    %978 = vmatprep.subr.mxu0 0.0
    %979 = vmatpush1.msra.mxu0 0.0
    %980 = vmatprep.subr.mxu0 0.0
    %981 = vmatpush1.msra.mxu0 0.0
    %982 = vmatprep.subr.mxu0 0.0
    %983 = vmatpush1.msra.mxu0 0.0
    %984 = vmatprep.subr.mxu0 0.0
    %985 = vmatpush1.msra.mxu0 0.0
    %986 = vmatprep.subr.mxu0 0.0
    %987 = vmatpush1.msra.mxu0 0.0
    %988 = vmatprep.subr.mxu0 0.0
    %989 = vmatpush1.msra.mxu0 0.0
    %990 = vmatprep.subr.mxu0 0.0
    %991 = vmatpush1.msra.mxu0 0.0
    %992 = vmatprep.subr.mxu0 0.0
    %993 = vmatpush1.msra.mxu0 0.0
    %994 = vmatprep.subr.mxu0 0.0
    %995 = vmatpush1.msra.mxu0 %v975
    %996 = vmatprep.subr.mxu0 0.0
    %997 = vmatpush1.msra.mxu0 %v970
    %998 = vmatprep.subr.mxu0 0.0
    %999 = vmatpush1.msra.mxu0 %v965
    %1000 = vmatprep.subr.mxu0 0.0
    %1001 = vmatpush1.msra.mxu0 %v960
    %1002 = vmatprep.subr.mxu0 0.0
    %1003 = vmatpush1.msra.mxu0 %v955
    %1004 = vmatprep.subr.mxu0 0.0
    %1005 = vmatpush1.msra.mxu0 %v950
    %1006 = vmatprep.subr.mxu0 0.0
    %1007 = vmatpush1.msra.mxu0 %v945
    %1008 = vmatprep.subr.mxu0 0.0
    %1009 = vmatpush1.msra.mxu0 %v940
    %1010 = vmatprep.subr.mxu0 0.0
    %1011 = vmatpush2.msra.mxu0 0.0
    %1012 = vmatprep.subr.mxu0 0.0
    %1013 = vmatpush2.msra.mxu0 0.0
    %1014 = vmatprep.subr.mxu0 0.0
    %1015 = vmatpush2.msra.mxu0 0.0
    %1016 = vmatprep.subr.mxu0 0.0
    %1017 = vmatpush2.msra.mxu0 0.0
    %1018 = vmatprep.subr.mxu0 0.0
    %1019 = vmatpush2.msra.mxu0 0.0
    %1020 = vmatprep.subr.mxu0 0.0
    %1021 = vmatpush2.msra.mxu0 0.0
    %1022 = vmatprep.subr.mxu0 0.0
    %1023 = vmatpush2.msra.mxu0 0.0
    %1024 = vmatprep.subr.mxu0 0.0
    %1025 = vmatpush2.msra.mxu0 0.0
    %1026 = vmatprep.subr.mxu0 0.0
    %1027 = vmatpush2.msra.mxu0 0.0
    %1028 = vmatprep.subr.mxu0 0.0
    %1029 = vmatpush2.msra.mxu0 0.0
    %1030 = vmatprep.subr.mxu0 0.0
    %1031 = vmatpush2.msra.mxu0 0.0
    %1032 = vmatprep.subr.mxu0 0.0
    %1033 = vmatpush2.msra.mxu0 0.0
    %1034 = vmatprep.subr.mxu0 0.0
    %1035 = vmatpush2.msra.mxu0 0.0
    %1036 = vmatprep.subr.mxu0 0.0
    %1037 = vmatpush2.msra.mxu0 0.0
    %1038 = vmatprep.subr.mxu0 0.0
    %1039 = vmatpush2.msra.mxu0 0.0
    %1040 = vmatprep.subr.mxu0 0.0
    %1041 = vmatpush2.msra.mxu0 0.0
    %1042 = vmatprep.mubr.f32.mxu0 0.0
    %1043 = vmatmul.mubr.f32.gmra.mxu0 %v220
    %v1044 = vpop.f32.mrf.mxu0
    %v1045 = vadd.f32 %v210, %v1044
    %v1046 = vpop.f32.mrf.mxu0
    %1047 = vmatprep.mubr.f32.mxu0 0.0
    %1048 = vmatmul.mubr.f32.gmra.mxu0 %v223
    %v1049 = vpop.f32.mrf.mxu0
    %v1050 = vadd.f32 %v211, %v1049
    %v1051 = vpop.f32.mrf.mxu0
    %1052 = vmatprep.mubr.f32.mxu0 0.0
    %1053 = vmatmul.mubr.f32.gmra.mxu0 %v226
    %v1054 = vpop.f32.mrf.mxu0
    %v1055 = vadd.f32 %v212, %v1054
    %v1056 = vpop.f32.mrf.mxu0
    %1057 = vmatprep.mubr.f32.mxu0 0.0
    %1058 = vmatmul.mubr.f32.gmra.mxu0 %v229
    %v1059 = vpop.f32.mrf.mxu0
    %v1060 = vadd.f32 %v213, %v1059
    %v1061 = vpop.f32.mrf.mxu0
    %1062 = vmatprep.mubr.f32.mxu0 0.0
    %1063 = vmatmul.mubr.f32.gmra.mxu0 %v232
    %v1064 = vpop.f32.mrf.mxu0
    %v1065 = vadd.f32 %v214, %v1064
    %v1066 = vpop.f32.mrf.mxu0
    %1067 = vmatprep.mubr.f32.mxu0 0.0
    %1068 = vmatmul.mubr.f32.gmra.mxu0 %v235
    %v1069 = vpop.f32.mrf.mxu0
    %v1070 = vadd.f32 %v215, %v1069
    %v1071 = vpop.f32.mrf.mxu0
    %1072 = vmatprep.mubr.f32.mxu0 0.0
    %1073 = vmatmul.mubr.f32.gmra.mxu0 %v238
    %v1074 = vpop.f32.mrf.mxu0
    %v1075 = vadd.f32 %v216, %v1074
    %v1076 = vpop.f32.mrf.mxu0
    %1077 = vmatprep.mubr.f32.mxu0 0.0
    %1078 = vmatmul.mubr.f32.gmra.mxu0 %v241
    %v1079 = vpop.f32.mrf.mxu0
    %v1080 = vadd.f32 %v217, %v1079
    %v1081 = vpop.f32.mrf.mxu0
    %1082 = vdwg.mxu0
    %1083 = vmatprep.subr.mxu0 0.0
    %1084 = vmatpush1.msra.mxu0 0.0
    %1085 = vmatprep.subr.mxu0 0.0
    %1086 = vmatpush1.msra.mxu0 0.0
    %1087 = vmatprep.subr.mxu0 0.0
    %1088 = vmatpush1.msra.mxu0 0.0
    %1089 = vmatprep.subr.mxu0 0.0
    %1090 = vmatpush1.msra.mxu0 0.0
    %1091 = vmatprep.subr.mxu0 0.0
    %1092 = vmatpush1.msra.mxu0 0.0
    %1093 = vmatprep.subr.mxu0 0.0
    %1094 = vmatpush1.msra.mxu0 0.0
    %1095 = vmatprep.subr.mxu0 0.0
    %1096 = vmatpush1.msra.mxu0 0.0
    %1097 = vmatprep.subr.mxu0 0.0
    %1098 = vmatpush1.msra.mxu0 0.0
    %1099 = vmatprep.subr.mxu0 0.0
    %1100 = vmatpush1.msra.mxu0 %v1080
    %1101 = vmatprep.subr.mxu0 0.0
    %1102 = vmatpush1.msra.mxu0 %v1075
    %1103 = vmatprep.subr.mxu0 0.0
    %1104 = vmatpush1.msra.mxu0 %v1070
    %1105 = vmatprep.subr.mxu0 0.0
    %1106 = vmatpush1.msra.mxu0 %v1065
    %1107 = vmatprep.subr.mxu0 0.0
    %1108 = vmatpush1.msra.mxu0 %v1060
    %1109 = vmatprep.subr.mxu0 0.0
    %1110 = vmatpush1.msra.mxu0 %v1055
    %1111 = vmatprep.subr.mxu0 0.0
    %1112 = vmatpush1.msra.mxu0 %v1050
    %1113 = vmatprep.subr.mxu0 0.0
    %1114 = vmatpush1.msra.mxu0 %v1045
    %1115 = vmatprep.subr.mxu0 0.0
    %1116 = vmatpush2.msra.mxu0 0.0
    %1117 = vmatprep.subr.mxu0 0.0
    %1118 = vmatpush2.msra.mxu0 0.0
    %1119 = vmatprep.subr.mxu0 0.0
    %1120 = vmatpush2.msra.mxu0 0.0
    %1121 = vmatprep.subr.mxu0 0.0
    %1122 = vmatpush2.msra.mxu0 0.0
    %1123 = vmatprep.subr.mxu0 0.0
    %1124 = vmatpush2.msra.mxu0 0.0
    %1125 = vmatprep.subr.mxu0 0.0
    %1126 = vmatpush2.msra.mxu0 0.0
    %1127 = vmatprep.subr.mxu0 0.0
    %1128 = vmatpush2.msra.mxu0 0.0
    %1129 = vmatprep.subr.mxu0 0.0
    %1130 = vmatpush2.msra.mxu0 0.0
    %1131 = vmatprep.subr.mxu0 0.0
    %1132 = vmatpush2.msra.mxu0 0.0
    %1133 = vmatprep.subr.mxu0 0.0
    %1134 = vmatpush2.msra.mxu0 0.0
    %1135 = vmatprep.subr.mxu0 0.0
    %1136 = vmatpush2.msra.mxu0 0.0
    %1137 = vmatprep.subr.mxu0 0.0
    %1138 = vmatpush2.msra.mxu0 0.0
    %1139 = vmatprep.subr.mxu0 0.0
    %1140 = vmatpush2.msra.mxu0 0.0
    %1141 = vmatprep.subr.mxu0 0.0
    %1142 = vmatpush2.msra.mxu0 0.0
    %1143 = vmatprep.subr.mxu0 0.0
    %1144 = vmatpush2.msra.mxu0 0.0
    %1145 = vmatprep.subr.mxu0 0.0
    %1146 = vmatpush2.msra.mxu0 0.0
    %1147 = vmatprep.mubr.f32.mxu0 0.0
    %1148 = vmatmul.mubr.f32.gmra.mxu0 %v220
    %v1149 = vpop.f32.mrf.mxu0
    %v1150 = vadd.f32 %v210, %v1149
    %v1151 = vpop.f32.mrf.mxu0
    %1152 = vmatprep.mubr.f32.mxu0 0.0
    %1153 = vmatmul.mubr.f32.gmra.mxu0 %v223
    %v1154 = vpop.f32.mrf.mxu0
    %v1155 = vadd.f32 %v211, %v1154
    %v1156 = vpop.f32.mrf.mxu0
    %1157 = vmatprep.mubr.f32.mxu0 0.0
    %1158 = vmatmul.mubr.f32.gmra.mxu0 %v226
    %v1159 = vpop.f32.mrf.mxu0
    %v1160 = vadd.f32 %v212, %v1159
    %v1161 = vpop.f32.mrf.mxu0
    %1162 = vmatprep.mubr.f32.mxu0 0.0
    %1163 = vmatmul.mubr.f32.gmra.mxu0 %v229
    %v1164 = vpop.f32.mrf.mxu0
    %v1165 = vadd.f32 %v213, %v1164
    %v1166 = vpop.f32.mrf.mxu0
    %1167 = vmatprep.mubr.f32.mxu0 0.0
    %1168 = vmatmul.mubr.f32.gmra.mxu0 %v232
    %v1169 = vpop.f32.mrf.mxu0
    %v1170 = vadd.f32 %v214, %v1169
    %v1171 = vpop.f32.mrf.mxu0
    %1172 = vmatprep.mubr.f32.mxu0 0.0
    %1173 = vmatmul.mubr.f32.gmra.mxu0 %v235
    %v1174 = vpop.f32.mrf.mxu0
    %v1175 = vadd.f32 %v215, %v1174
    %v1176 = vpop.f32.mrf.mxu0
    %1177 = vmatprep.mubr.f32.mxu0 0.0
    %1178 = vmatmul.mubr.f32.gmra.mxu0 %v238
    %v1179 = vpop.f32.mrf.mxu0
    %v1180 = vadd.f32 %v216, %v1179
    %v1181 = vpop.f32.mrf.mxu0
    %1182 = vmatprep.mubr.f32.mxu0 0.0
    %1183 = vmatmul.mubr.f32.gmra.mxu0 %v241
    %v1184 = vpop.f32.mrf.mxu0
    %v1185 = vadd.f32 %v217, %v1184
    %v1186 = vpop.f32.mrf.mxu0
    %1187 = vdwg.mxu0
    %1188 = vmatprep.subr.mxu0 0.0
    %1189 = vmatpush1.msra.mxu0 0.0
    %1190 = vmatprep.subr.mxu0 0.0
    %1191 = vmatpush1.msra.mxu0 0.0
    %1192 = vmatprep.subr.mxu0 0.0
    %1193 = vmatpush1.msra.mxu0 0.0
    %1194 = vmatprep.subr.mxu0 0.0
    %1195 = vmatpush1.msra.mxu0 0.0
    %1196 = vmatprep.subr.mxu0 0.0
    %1197 = vmatpush1.msra.mxu0 0.0
    %1198 = vmatprep.subr.mxu0 0.0
    %1199 = vmatpush1.msra.mxu0 0.0
    %1200 = vmatprep.subr.mxu0 0.0
    %1201 = vmatpush1.msra.mxu0 0.0
    %1202 = vmatprep.subr.mxu0 0.0
    %1203 = vmatpush1.msra.mxu0 0.0
    %1204 = vmatprep.subr.mxu0 0.0
    %1205 = vmatpush1.msra.mxu0 %v1185
    %1206 = vmatprep.subr.mxu0 0.0
    %1207 = vmatpush1.msra.mxu0 %v1180
    %1208 = vmatprep.subr.mxu0 0.0
    %1209 = vmatpush1.msra.mxu0 %v1175
    %1210 = vmatprep.subr.mxu0 0.0
    %1211 = vmatpush1.msra.mxu0 %v1170
    %1212 = vmatprep.subr.mxu0 0.0
    %1213 = vmatpush1.msra.mxu0 %v1165
    %1214 = vmatprep.subr.mxu0 0.0
    %1215 = vmatpush1.msra.mxu0 %v1160
    %1216 = vmatprep.subr.mxu0 0.0
    %1217 = vmatpush1.msra.mxu0 %v1155
    %1218 = vmatprep.subr.mxu0 0.0
    %1219 = vmatpush1.msra.mxu0 %v1150
    %1220 = vmatprep.subr.mxu0 0.0
    %1221 = vmatpush2.msra.mxu0 0.0
    %1222 = vmatprep.subr.mxu0 0.0
    %1223 = vmatpush2.msra.mxu0 0.0
    %1224 = vmatprep.subr.mxu0 0.0
    %1225 = vmatpush2.msra.mxu0 0.0
    %1226 = vmatprep.subr.mxu0 0.0
    %1227 = vmatpush2.msra.mxu0 0.0
    %1228 = vmatprep.subr.mxu0 0.0
    %1229 = vmatpush2.msra.mxu0 0.0
    %1230 = vmatprep.subr.mxu0 0.0
    %1231 = vmatpush2.msra.mxu0 0.0
    %1232 = vmatprep.subr.mxu0 0.0
    %1233 = vmatpush2.msra.mxu0 0.0
    %1234 = vmatprep.subr.mxu0 0.0
    %1235 = vmatpush2.msra.mxu0 0.0
    %1236 = vmatprep.subr.mxu0 0.0
    %1237 = vmatpush2.msra.mxu0 0.0
    %1238 = vmatprep.subr.mxu0 0.0
    %1239 = vmatpush2.msra.mxu0 0.0
    %1240 = vmatprep.subr.mxu0 0.0
    %1241 = vmatpush2.msra.mxu0 0.0
    %1242 = vmatprep.subr.mxu0 0.0
    %1243 = vmatpush2.msra.mxu0 0.0
    %1244 = vmatprep.subr.mxu0 0.0
    %1245 = vmatpush2.msra.mxu0 0.0
    %1246 = vmatprep.subr.mxu0 0.0
    %1247 = vmatpush2.msra.mxu0 0.0
    %1248 = vmatprep.subr.mxu0 0.0
    %1249 = vmatpush2.msra.mxu0 0.0
    %1250 = vmatprep.subr.mxu0 0.0
    %1251 = vmatpush2.msra.mxu0 0.0
    %1252 = vmatprep.mubr.f32.mxu0 0.0
    %1253 = vmatmul.mubr.f32.gmra.mxu0 %v220
    %v1254 = vpop.f32.mrf.mxu0
    %v1255 = vadd.f32 %v210, %v1254
    %v1256 = vpop.f32.mrf.mxu0
    %1257 = vmatprep.mubr.f32.mxu0 0.0
    %1258 = vmatmul.mubr.f32.gmra.mxu0 %v223
    %v1259 = vpop.f32.mrf.mxu0
    %v1260 = vadd.f32 %v211, %v1259
    %v1261 = vpop.f32.mrf.mxu0
    %1262 = vmatprep.mubr.f32.mxu0 0.0
    %1263 = vmatmul.mubr.f32.gmra.mxu0 %v226
    %v1264 = vpop.f32.mrf.mxu0
    %v1265 = vadd.f32 %v212, %v1264
    %v1266 = vpop.f32.mrf.mxu0
    %1267 = vmatprep.mubr.f32.mxu0 0.0
    %1268 = vmatmul.mubr.f32.gmra.mxu0 %v229
    %v1269 = vpop.f32.mrf.mxu0
    %v1270 = vadd.f32 %v213, %v1269
    %v1271 = vpop.f32.mrf.mxu0
    %1272 = vmatprep.mubr.f32.mxu0 0.0
    %1273 = vmatmul.mubr.f32.gmra.mxu0 %v232
    %v1274 = vpop.f32.mrf.mxu0
    %v1275 = vadd.f32 %v214, %v1274
    %v1276 = vpop.f32.mrf.mxu0
    %1277 = vmatprep.mubr.f32.mxu0 0.0
    %1278 = vmatmul.mubr.f32.gmra.mxu0 %v235
    %v1279 = vpop.f32.mrf.mxu0
    %v1280 = vadd.f32 %v215, %v1279
    %v1281 = vpop.f32.mrf.mxu0
    %1282 = vmatprep.mubr.f32.mxu0 0.0
    %1283 = vmatmul.mubr.f32.gmra.mxu0 %v238
    %v1284 = vpop.f32.mrf.mxu0
    %v1285 = vadd.f32 %v216, %v1284
    %v1286 = vpop.f32.mrf.mxu0
    %1287 = vmatprep.mubr.f32.mxu0 0.0
    %1288 = vmatmul.mubr.f32.gmra.mxu0 %v241
    %v1289 = vpop.f32.mrf.mxu0
    %v1290 = vadd.f32 %v217, %v1289
    %v1291 = vpop.f32.mrf.mxu0
    %1292 = vdwg.mxu0
    %v1293 = vadd.f32 %v1255, %v1260
    %v1294 = vadd.f32 %v1293, %v1265
    %v1295 = vadd.f32 %v1294, %v1270
    %v1296 = vadd.f32 %v1295, %v1275
    %v1297 = vadd.f32 %v1296, %v1280
    %v1298 = vadd.f32 %v1297, %v1285
    %v1299 = vadd.f32 %v1298, %v1290
    %v1300 = vrot.slane %v1299, 4
    %v1301 = vadd.f32 %v1299, %v1300
    %v1302 = vrot.slane %v1301, 2
    %v1303 = vadd.f32 %v1301, %v1302
    %v1304 = vrot.slane %v1303, 1
    %v1305 = vadd.f32 %v1303, %v1304
    %v1306 = vrcp.pop 64.0
    %v1307 = vmul.f32 %v1305, %v1306
    %v1308 = vmul.f32 %v1255, %v1255
    %v1309 = vmul.f32 %v1260, %v1260
    %v1310 = vmul.f32 %v1265, %v1265
    %v1311 = vmul.f32 %v1270, %v1270
    %v1312 = vmul.f32 %v1275, %v1275
    %v1313 = vmul.f32 %v1280, %v1280
    %v1314 = vmul.f32 %v1285, %v1285
    %v1315 = vmul.f32 %v1290, %v1290
    %v1316 = vadd.f32 %v1308, %v1309
    %v1317 = vadd.f32 %v1316, %v1310
    %v1318 = vadd.f32 %v1317, %v1311
    %v1319 = vadd.f32 %v1318, %v1312
    %v1320 = vadd.f32 %v1319, %v1313
    %v1321 = vadd.f32 %v1320, %v1314
    %v1322 = vadd.f32 %v1321, %v1315
    %v1323 = vrot.slane %v1322, 4
    %v1324 = vadd.f32 %v1322, %v1323
    %v1325 = vrot.slane %v1324, 2
    %v1326 = vadd.f32 %v1324, %v1325
    %v1327 = vrot.slane %v1326, 1
    %v1328 = vadd.f32 %v1326, %v1327
    %v1329 = vmul.f32 %v1328, %v1306
    %v1330 = vmul.f32 %v1307, %v1307
    %v1331 = vsub.f32 %v1329, %v1330
    %v1332 = vmax.f32 %v1331, 0.0
    %v1333 = vsub.f32 %v1255, %v1307
    %v1334 = vsub.f32 %v1260, %v1307
    %v1335 = vsub.f32 %v1265, %v1307
    %v1336 = vsub.f32 %v1270, %v1307
    %v1337 = vsub.f32 %v1275, %v1307
    %v1338 = vsub.f32 %v1280, %v1307
    %v1339 = vsub.f32 %v1285, %v1307
    %v1340 = vsub.f32 %v1290, %v1307
    %v1341 = vadd.f32 %v1332, 1e-05
    %v1342 = vrsqrt.pop %v1341
    %v1343 = vmul.f32 %v1333, %v1342
    %v1344 = vmul.f32 %v1334, %v1342
    %v1345 = vmul.f32 %v1335, %v1342
    %v1346 = vmul.f32 %v1336, %v1342
    %v1347 = vmul.f32 %v1337, %v1342
    %v1348 = vmul.f32 %v1338, %v1342
    %v1349 = vmul.f32 %v1339, %v1342
    %v1350 = vmul.f32 %v1340, %v1342
    %v1351 = vlaneseq
    %v1352 = vshrl.u32 %v1351, 7
    %v1353 = vsub.s32 0, %v1352
    %v1354 = vrot.slane %v59, %v1353
    %v1355 = vmul.f32 %v1343, %v1354
    %v1356 = vmul.f32 %v1344, %v1354
    %v1357 = vmul.f32 %v1345, %v1354
    %v1358 = vmul.f32 %v1346, %v1354
    %v1359 = vmul.f32 %v1347, %v1354
    %v1360 = vmul.f32 %v1348, %v1354
    %v1361 = vmul.f32 %v1349, %v1354
    %v1362 = vmul.f32 %v1350, %v1354
    %v1363 = vlaneseq
    %v1364 = vshrl.u32 %v1363, 7
    %v1365 = vsub.s32 0, %v1364
    %v1366 = vrot.slane %v60, %v1365
    %v1367 = vadd.f32 %v1355, %v1366
    %v1368 = vadd.f32 %v1356, %v1366
    %v1369 = vadd.f32 %v1357, %v1366
    %v1370 = vadd.f32 %v1358, %v1366
    %v1371 = vadd.f32 %v1359, %v1366
    %v1372 = vadd.f32 %v1360, %v1366
    %v1373 = vadd.f32 %v1361, %v1366
    %v1374 = vadd.f32 %v1362, %v1366
    %v1375 = vmax.f32 %v1367, 0.0
    %v1376 = vmax.f32 %v1368, 0.0
    %v1377 = vmax.f32 %v1369, 0.0
    %v1378 = vmax.f32 %v1370, 0.0
    %v1379 = vmax.f32 %v1371, 0.0
    %v1380 = vmax.f32 %v1372, 0.0
    %v1381 = vmax.f32 %v1373, 0.0
    %v1382 = vmax.f32 %v1374, 0.0
    %v1383 = vld [vmem:[#allocation5] sm:$0xff]
    %v1384 = vld [vmem:[#allocation5 + $0x8] sm:$0xff]
    %v1385 = vld [vmem:[#allocation5 + $0x10] sm:$0xff]
    %v1386 = vld [vmem:[#allocation5 + $0x18] sm:$0xff]
    %v1387 = vld [vmem:[#allocation5 + $0x20] sm:$0xff]
    %v1388 = vld [vmem:[#allocation5 + $0x28] sm:$0xff]
    %v1389 = vld [vmem:[#allocation5 + $0x30] sm:$0xff]
    %v1390 = vld [vmem:[#allocation5 + $0x38] sm:$0xff]
    %v1391 = vld [vmem:[#allocation5 + $0x40] sm:$0xff]
    %v1392 = vld [vmem:[#allocation5 + $0x48] sm:$0xff]
    %v1393 = vld [vmem:[#allocation5 + $0x50] sm:$0xff]
    %v1394 = vld [vmem:[#allocation5 + $0x58] sm:$0xff]
    %v1395 = vld [vmem:[#allocation5 + $0x60] sm:$0xff]
    %v1396 = vld [vmem:[#allocation5 + $0x68] sm:$0xff]
    %v1397 = vld [vmem:[#allocation5 + $0x70] sm:$0xff]
    %v1398 = vld [vmem:[#allocation5 + $0x78] sm:$0xff]
    %v1399 = vlaneseq
    %v1400 = vshrl.u32 %v1399, 7
    %v1401 = vsub.s32 0, %v1400
    %v1402 = vrot.slane %v61, %v1401
    %1403 = vmatprep.subr.mxu0 0.0
    %1404 = vmatpush1.msra.mxu0 %v1398
    %1405 = vmatprep.subr.mxu0 0.0
    %1406 = vmatpush1.msra.mxu0 %v1397
    %1407 = vmatprep.subr.mxu0 0.0
    %1408 = vmatpush1.msra.mxu0 %v1396
    %1409 = vmatprep.subr.mxu0 0.0
    %1410 = vmatpush1.msra.mxu0 %v1395
    %1411 = vmatprep.subr.mxu0 0.0
    %1412 = vmatpush1.msra.mxu0 %v1394
    %1413 = vmatprep.subr.mxu0 0.0
    %1414 = vmatpush1.msra.mxu0 %v1393
    %1415 = vmatprep.subr.mxu0 0.0
    %1416 = vmatpush1.msra.mxu0 %v1392
    %1417 = vmatprep.subr.mxu0 0.0
    %1418 = vmatpush1.msra.mxu0 %v1391
    %1419 = vmatprep.subr.mxu0 0.0
    %1420 = vmatpush1.msra.mxu0 %v1390
    %1421 = vmatprep.subr.mxu0 0.0
    %1422 = vmatpush1.msra.mxu0 %v1389
    %1423 = vmatprep.subr.mxu0 0.0
    %1424 = vmatpush1.msra.mxu0 %v1388
    %1425 = vmatprep.subr.mxu0 0.0
    %1426 = vmatpush1.msra.mxu0 %v1387
    %1427 = vmatprep.subr.mxu0 0.0
    %1428 = vmatpush1.msra.mxu0 %v1386
    %1429 = vmatprep.subr.mxu0 0.0
    %1430 = vmatpush1.msra.mxu0 %v1385
    %1431 = vmatprep.subr.mxu0 0.0
    %1432 = vmatpush1.msra.mxu0 %v1384
    %1433 = vmatprep.subr.mxu0 0.0
    %1434 = vmatpush1.msra.mxu0 %v1383
    %1435 = vmatprep.subr.mxu0 0.0
    %1436 = vmatpush2.msra.mxu0 0.0
    %1437 = vmatprep.subr.mxu0 0.0
    %1438 = vmatpush2.msra.mxu0 0.0
    %1439 = vmatprep.subr.mxu0 0.0
    %1440 = vmatpush2.msra.mxu0 0.0
    %1441 = vmatprep.subr.mxu0 0.0
    %1442 = vmatpush2.msra.mxu0 0.0
    %1443 = vmatprep.subr.mxu0 0.0
    %1444 = vmatpush2.msra.mxu0 0.0
    %1445 = vmatprep.subr.mxu0 0.0
    %1446 = vmatpush2.msra.mxu0 0.0
    %1447 = vmatprep.subr.mxu0 0.0
    %1448 = vmatpush2.msra.mxu0 0.0
    %1449 = vmatprep.subr.mxu0 0.0
    %1450 = vmatpush2.msra.mxu0 0.0
    %1451 = vmatprep.subr.mxu0 0.0
    %1452 = vmatpush2.msra.mxu0 0.0
    %1453 = vmatprep.subr.mxu0 0.0
    %1454 = vmatpush2.msra.mxu0 0.0
    %1455 = vmatprep.subr.mxu0 0.0
    %1456 = vmatpush2.msra.mxu0 0.0
    %1457 = vmatprep.subr.mxu0 0.0
    %1458 = vmatpush2.msra.mxu0 0.0
    %1459 = vmatprep.subr.mxu0 0.0
    %1460 = vmatpush2.msra.mxu0 0.0
    %1461 = vmatprep.subr.mxu0 0.0
    %1462 = vmatpush2.msra.mxu0 0.0
    %1463 = vmatprep.subr.mxu0 0.0
    %1464 = vmatpush2.msra.mxu0 0.0
    %1465 = vmatprep.subr.mxu0 0.0
    %1466 = vmatpush2.msra.mxu0 0.0
    %1467 = vmatprep.mubr.f32.mxu0 0.0
    %1468 = vmatmul.mubr.f32.gmra.mxu0 %v1375
    %v1469 = vpop.f32.mrf.mxu0
    %v1470 = vadd.f32 %v1402, %v1469
    %v1471 = vpop.f32.mrf.mxu0
    %1472 = vmatprep.mubr.f32.mxu0 0.0
    %1473 = vmatmul.mubr.f32.gmra.mxu0 %v1376
    %v1474 = vpop.f32.mrf.mxu0
    %v1475 = vadd.f32 %v1402, %v1474
    %v1476 = vpop.f32.mrf.mxu0
    %1477 = vmatprep.mubr.f32.mxu0 0.0
    %1478 = vmatmul.mubr.f32.gmra.mxu0 %v1377
    %v1479 = vpop.f32.mrf.mxu0
    %v1480 = vadd.f32 %v1402, %v1479
    %v1481 = vpop.f32.mrf.mxu0
    %1482 = vmatprep.mubr.f32.mxu0 0.0
    %1483 = vmatmul.mubr.f32.gmra.mxu0 %v1378
    %v1484 = vpop.f32.mrf.mxu0
    %v1485 = vadd.f32 %v1402, %v1484
    %v1486 = vpop.f32.mrf.mxu0
    %1487 = vmatprep.mubr.f32.mxu0 0.0
    %1488 = vmatmul.mubr.f32.gmra.mxu0 %v1379
    %v1489 = vpop.f32.mrf.mxu0
    %v1490 = vadd.f32 %v1402, %v1489
    %v1491 = vpop.f32.mrf.mxu0
    %1492 = vmatprep.mubr.f32.mxu0 0.0
    %1493 = vmatmul.mubr.f32.gmra.mxu0 %v1380
    %v1494 = vpop.f32.mrf.mxu0
    %v1495 = vadd.f32 %v1402, %v1494
    %v1496 = vpop.f32.mrf.mxu0
    %1497 = vmatprep.mubr.f32.mxu0 0.0
    %1498 = vmatmul.mubr.f32.gmra.mxu0 %v1381
    %v1499 = vpop.f32.mrf.mxu0
    %v1500 = vadd.f32 %v1402, %v1499
    %v1501 = vpop.f32.mrf.mxu0
    %1502 = vmatprep.mubr.f32.mxu0 0.0
    %1503 = vmatmul.mubr.f32.gmra.mxu0 %v1382
    %v1504 = vpop.f32.mrf.mxu0
    %v1505 = vadd.f32 %v1402, %v1504
    %v1506 = vpop.f32.mrf.mxu0
    %1507 = vdwg.mxu0
    %v1508 = vmul.f32 %v1470, 0.1
    %v1509 = vmul.f32 %v1475, 0.1
    %v1510 = vmul.f32 %v1480, 0.1
    %v1511 = vmul.f32 %v1485, 0.1
    %v1512 = vmul.f32 %v1490, 0.1
    %v1513 = vmul.f32 %v1495, 0.1
    %v1514 = vmul.f32 %v1500, 0.1
    %v1515 = vmul.f32 %v1505, 0.1
    %1516 = vmatprep.subr.mxu0 0.0
    %1517 = vmatpush1.msra.mxu0 0.0
    %1518 = vmatprep.subr.mxu0 0.0
    %1519 = vmatpush1.msra.mxu0 0.0
    %1520 = vmatprep.subr.mxu0 0.0
    %1521 = vmatpush1.msra.mxu0 0.0
    %1522 = vmatprep.subr.mxu0 0.0
    %1523 = vmatpush1.msra.mxu0 0.0
    %1524 = vmatprep.subr.mxu0 0.0
    %1525 = vmatpush1.msra.mxu0 0.0
    %1526 = vmatprep.subr.mxu0 0.0
    %1527 = vmatpush1.msra.mxu0 0.0
    %1528 = vmatprep.subr.mxu0 0.0
    %1529 = vmatpush1.msra.mxu0 0.0
    %1530 = vmatprep.subr.mxu0 0.0
    %1531 = vmatpush1.msra.mxu0 0.0
    %1532 = vmatprep.subr.mxu0 0.0
    %1533 = vmatpush1.msra.mxu0 %v1505
    %1534 = vmatprep.subr.mxu0 0.0
    %1535 = vmatpush1.msra.mxu0 %v1500
    %1536 = vmatprep.subr.mxu0 0.0
    %1537 = vmatpush1.msra.mxu0 %v1495
    %1538 = vmatprep.subr.mxu0 0.0
    %1539 = vmatpush1.msra.mxu0 %v1490
    %1540 = vmatprep.subr.mxu0 0.0
    %1541 = vmatpush1.msra.mxu0 %v1485
    %1542 = vmatprep.subr.mxu0 0.0
    %1543 = vmatpush1.msra.mxu0 %v1480
    %1544 = vmatprep.subr.mxu0 0.0
    %1545 = vmatpush1.msra.mxu0 %v1475
    %1546 = vmatprep.subr.mxu0 0.0
    %1547 = vmatpush1.msra.mxu0 %v1470
    %1548 = vmatprep.subr.mxu0 0.0
    %1549 = vmatpush2.msra.mxu0 0.0
    %1550 = vmatprep.subr.mxu0 0.0
    %1551 = vmatpush2.msra.mxu0 0.0
    %1552 = vmatprep.subr.mxu0 0.0
    %1553 = vmatpush2.msra.mxu0 0.0
    %1554 = vmatprep.subr.mxu0 0.0
    %1555 = vmatpush2.msra.mxu0 0.0
    %1556 = vmatprep.subr.mxu0 0.0
    %1557 = vmatpush2.msra.mxu0 0.0
    %1558 = vmatprep.subr.mxu0 0.0
    %1559 = vmatpush2.msra.mxu0 0.0
    %1560 = vmatprep.subr.mxu0 0.0
    %1561 = vmatpush2.msra.mxu0 0.0
    %1562 = vmatprep.subr.mxu0 0.0
    %1563 = vmatpush2.msra.mxu0 0.0
    %1564 = vmatprep.subr.mxu0 0.0
    %1565 = vmatpush2.msra.mxu0 0.0
    %1566 = vmatprep.subr.mxu0 0.0
    %1567 = vmatpush2.msra.mxu0 0.0
    %1568 = vmatprep.subr.mxu0 0.0
    %1569 = vmatpush2.msra.mxu0 0.0
    %1570 = vmatprep.subr.mxu0 0.0
    %1571 = vmatpush2.msra.mxu0 0.0
    %1572 = vmatprep.subr.mxu0 0.0
    %1573 = vmatpush2.msra.mxu0 0.0
    %1574 = vmatprep.subr.mxu0 0.0
    %1575 = vmatpush2.msra.mxu0 0.0
    %1576 = vmatprep.subr.mxu0 0.0
    %1577 = vmatpush2.msra.mxu0 0.0
    %1578 = vmatprep.subr.mxu0 0.0
    %1579 = vmatpush2.msra.mxu0 0.0
    %1580 = vmatprep.mubr.f32.mxu0 0.0
    %1581 = vmatmul.mubr.f32.gmra.mxu0 %v220
    %v1582 = vpop.f32.mrf.mxu0
    %v1583 = vadd.f32 %v1508, %v1582
    %v1584 = vpop.f32.mrf.mxu0
    %1585 = vmatprep.mubr.f32.mxu0 0.0
    %1586 = vmatmul.mubr.f32.gmra.mxu0 %v223
    %v1587 = vpop.f32.mrf.mxu0
    %v1588 = vadd.f32 %v1509, %v1587
    %v1589 = vpop.f32.mrf.mxu0
    %1590 = vmatprep.mubr.f32.mxu0 0.0
    %1591 = vmatmul.mubr.f32.gmra.mxu0 %v226
    %v1592 = vpop.f32.mrf.mxu0
    %v1593 = vadd.f32 %v1510, %v1592
    %v1594 = vpop.f32.mrf.mxu0
    %1595 = vmatprep.mubr.f32.mxu0 0.0
    %1596 = vmatmul.mubr.f32.gmra.mxu0 %v229
    %v1597 = vpop.f32.mrf.mxu0
    %v1598 = vadd.f32 %v1511, %v1597
    %v1599 = vpop.f32.mrf.mxu0
    %1600 = vmatprep.mubr.f32.mxu0 0.0
    %1601 = vmatmul.mubr.f32.gmra.mxu0 %v232
    %v1602 = vpop.f32.mrf.mxu0
    %v1603 = vadd.f32 %v1512, %v1602
    %v1604 = vpop.f32.mrf.mxu0
    %1605 = vmatprep.mubr.f32.mxu0 0.0
    %1606 = vmatmul.mubr.f32.gmra.mxu0 %v235
    %v1607 = vpop.f32.mrf.mxu0
    %v1608 = vadd.f32 %v1513, %v1607
    %v1609 = vpop.f32.mrf.mxu0
    %1610 = vmatprep.mubr.f32.mxu0 0.0
    %1611 = vmatmul.mubr.f32.gmra.mxu0 %v238
    %v1612 = vpop.f32.mrf.mxu0
    %v1613 = vadd.f32 %v1514, %v1612
    %v1614 = vpop.f32.mrf.mxu0
    %1615 = vmatprep.mubr.f32.mxu0 0.0
    %1616 = vmatmul.mubr.f32.gmra.mxu0 %v241
    %v1617 = vpop.f32.mrf.mxu0
    %v1618 = vadd.f32 %v1515, %v1617
    %v1619 = vpop.f32.mrf.mxu0
    %1620 = vdwg.mxu0
    %1621 = vmatprep.subr.mxu0 0.0
    %1622 = vmatpush1.msra.mxu0 0.0
    %1623 = vmatprep.subr.mxu0 0.0
    %1624 = vmatpush1.msra.mxu0 0.0
    %1625 = vmatprep.subr.mxu0 0.0
    %1626 = vmatpush1.msra.mxu0 0.0
    %1627 = vmatprep.subr.mxu0 0.0
    %1628 = vmatpush1.msra.mxu0 0.0
    %1629 = vmatprep.subr.mxu0 0.0
    %1630 = vmatpush1.msra.mxu0 0.0
    %1631 = vmatprep.subr.mxu0 0.0
    %1632 = vmatpush1.msra.mxu0 0.0
    %1633 = vmatprep.subr.mxu0 0.0
    %1634 = vmatpush1.msra.mxu0 0.0
    %1635 = vmatprep.subr.mxu0 0.0
    %1636 = vmatpush1.msra.mxu0 0.0
    %1637 = vmatprep.subr.mxu0 0.0
    %1638 = vmatpush1.msra.mxu0 %v1618
    %1639 = vmatprep.subr.mxu0 0.0
    %1640 = vmatpush1.msra.mxu0 %v1613
    %1641 = vmatprep.subr.mxu0 0.0
    %1642 = vmatpush1.msra.mxu0 %v1608
    %1643 = vmatprep.subr.mxu0 0.0
    %1644 = vmatpush1.msra.mxu0 %v1603
    %1645 = vmatprep.subr.mxu0 0.0
    %1646 = vmatpush1.msra.mxu0 %v1598
    %1647 = vmatprep.subr.mxu0 0.0
    %1648 = vmatpush1.msra.mxu0 %v1593
    %1649 = vmatprep.subr.mxu0 0.0
    %1650 = vmatpush1.msra.mxu0 %v1588
    %1651 = vmatprep.subr.mxu0 0.0
    %1652 = vmatpush1.msra.mxu0 %v1583
    %1653 = vmatprep.subr.mxu0 0.0
    %1654 = vmatpush2.msra.mxu0 0.0
    %1655 = vmatprep.subr.mxu0 0.0
    %1656 = vmatpush2.msra.mxu0 0.0
    %1657 = vmatprep.subr.mxu0 0.0
    %1658 = vmatpush2.msra.mxu0 0.0
    %1659 = vmatprep.subr.mxu0 0.0
    %1660 = vmatpush2.msra.mxu0 0.0
    %1661 = vmatprep.subr.mxu0 0.0
    %1662 = vmatpush2.msra.mxu0 0.0
    %1663 = vmatprep.subr.mxu0 0.0
    %1664 = vmatpush2.msra.mxu0 0.0
    %1665 = vmatprep.subr.mxu0 0.0
    %1666 = vmatpush2.msra.mxu0 0.0
    %1667 = vmatprep.subr.mxu0 0.0
    %1668 = vmatpush2.msra.mxu0 0.0
    %1669 = vmatprep.subr.mxu0 0.0
    %1670 = vmatpush2.msra.mxu0 0.0
    %1671 = vmatprep.subr.mxu0 0.0
    %1672 = vmatpush2.msra.mxu0 0.0
    %1673 = vmatprep.subr.mxu0 0.0
    %1674 = vmatpush2.msra.mxu0 0.0
    %1675 = vmatprep.subr.mxu0 0.0
    %1676 = vmatpush2.msra.mxu0 0.0
    %1677 = vmatprep.subr.mxu0 0.0
    %1678 = vmatpush2.msra.mxu0 0.0
    %1679 = vmatprep.subr.mxu0 0.0
    %1680 = vmatpush2.msra.mxu0 0.0
    %1681 = vmatprep.subr.mxu0 0.0
    %1682 = vmatpush2.msra.mxu0 0.0
    %1683 = vmatprep.subr.mxu0 0.0
    %1684 = vmatpush2.msra.mxu0 0.0
    %1685 = vmatprep.mubr.f32.mxu0 0.0
    %1686 = vmatmul.mubr.f32.gmra.mxu0 %v220
    %v1687 = vpop.f32.mrf.mxu0
    %v1688 = vadd.f32 %v1508, %v1687
    %v1689 = vpop.f32.mrf.mxu0
    %1690 = vmatprep.mubr.f32.mxu0 0.0
    %1691 = vmatmul.mubr.f32.gmra.mxu0 %v223
    %v1692 = vpop.f32.mrf.mxu0
    %v1693 = vadd.f32 %v1509, %v1692
    %v1694 = vpop.f32.mrf.mxu0
    %1695 = vmatprep.mubr.f32.mxu0 0.0
    %1696 = vmatmul.mubr.f32.gmra.mxu0 %v226
    %v1697 = vpop.f32.mrf.mxu0
    %v1698 = vadd.f32 %v1510, %v1697
    %v1699 = vpop.f32.mrf.mxu0
    %1700 = vmatprep.mubr.f32.mxu0 0.0
    %1701 = vmatmul.mubr.f32.gmra.mxu0 %v229
    %v1702 = vpop.f32.mrf.mxu0
    %v1703 = vadd.f32 %v1511, %v1702
    %v1704 = vpop.f32.mrf.mxu0
    %1705 = vmatprep.mubr.f32.mxu0 0.0
    %1706 = vmatmul.mubr.f32.gmra.mxu0 %v232
    %v1707 = vpop.f32.mrf.mxu0
    %v1708 = vadd.f32 %v1512, %v1707
    %v1709 = vpop.f32.mrf.mxu0
    %1710 = vmatprep.mubr.f32.mxu0 0.0
    %1711 = vmatmul.mubr.f32.gmra.mxu0 %v235
    %v1712 = vpop.f32.mrf.mxu0
    %v1713 = vadd.f32 %v1513, %v1712
    %v1714 = vpop.f32.mrf.mxu0
    %1715 = vmatprep.mubr.f32.mxu0 0.0
    %1716 = vmatmul.mubr.f32.gmra.mxu0 %v238
    %v1717 = vpop.f32.mrf.mxu0
    %v1718 = vadd.f32 %v1514, %v1717
    %v1719 = vpop.f32.mrf.mxu0
    %1720 = vmatprep.mubr.f32.mxu0 0.0
    %1721 = vmatmul.mubr.f32.gmra.mxu0 %v241
    %v1722 = vpop.f32.mrf.mxu0
    %v1723 = vadd.f32 %v1515, %v1722
    %v1724 = vpop.f32.mrf.mxu0
    %1725 = vdwg.mxu0
    %1726 = vmatprep.subr.mxu0 0.0
    %1727 = vmatpush1.msra.mxu0 0.0
    %1728 = vmatprep.subr.mxu0 0.0
    %1729 = vmatpush1.msra.mxu0 0.0
    %1730 = vmatprep.subr.mxu0 0.0
    %1731 = vmatpush1.msra.mxu0 0.0
    %1732 = vmatprep.subr.mxu0 0.0
    %1733 = vmatpush1.msra.mxu0 0.0
    %1734 = vmatprep.subr.mxu0 0.0
    %1735 = vmatpush1.msra.mxu0 0.0
    %1736 = vmatprep.subr.mxu0 0.0
    %1737 = vmatpush1.msra.mxu0 0.0
    %1738 = vmatprep.subr.mxu0 0.0
    %1739 = vmatpush1.msra.mxu0 0.0
    %1740 = vmatprep.subr.mxu0 0.0
    %1741 = vmatpush1.msra.mxu0 0.0
    %1742 = vmatprep.subr.mxu0 0.0
    %1743 = vmatpush1.msra.mxu0 %v1723
    %1744 = vmatprep.subr.mxu0 0.0
    %1745 = vmatpush1.msra.mxu0 %v1718
    %1746 = vmatprep.subr.mxu0 0.0
    %1747 = vmatpush1.msra.mxu0 %v1713
    %1748 = vmatprep.subr.mxu0 0.0
    %1749 = vmatpush1.msra.mxu0 %v1708
    %1750 = vmatprep.subr.mxu0 0.0
    %1751 = vmatpush1.msra.mxu0 %v1703
    %1752 = vmatprep.subr.mxu0 0.0
    %1753 = vmatpush1.msra.mxu0 %v1698
    %1754 = vmatprep.subr.mxu0 0.0
    %1755 = vmatpush1.msra.mxu0 %v1693
    %1756 = vmatprep.subr.mxu0 0.0
    %1757 = vmatpush1.msra.mxu0 %v1688
    %1758 = vmatprep.subr.mxu0 0.0
    %1759 = vmatpush2.msra.mxu0 0.0
    %1760 = vmatprep.subr.mxu0 0.0
    %1761 = vmatpush2.msra.mxu0 0.0
    %1762 = vmatprep.subr.mxu0 0.0
    %1763 = vmatpush2.msra.mxu0 0.0
    %1764 = vmatprep.subr.mxu0 0.0
    %1765 = vmatpush2.msra.mxu0 0.0
    %1766 = vmatprep.subr.mxu0 0.0
    %1767 = vmatpush2.msra.mxu0 0.0
    %1768 = vmatprep.subr.mxu0 0.0
    %1769 = vmatpush2.msra.mxu0 0.0
    %1770 = vmatprep.subr.mxu0 0.0
    %1771 = vmatpush2.msra.mxu0 0.0
    %1772 = vmatprep.subr.mxu0 0.0
    %1773 = vmatpush2.msra.mxu0 0.0
    %1774 = vmatprep.subr.mxu0 0.0
    %1775 = vmatpush2.msra.mxu0 0.0
    %1776 = vmatprep.subr.mxu0 0.0
    %1777 = vmatpush2.msra.mxu0 0.0
    %1778 = vmatprep.subr.mxu0 0.0
    %1779 = vmatpush2.msra.mxu0 0.0
    %1780 = vmatprep.subr.mxu0 0.0
    %1781 = vmatpush2.msra.mxu0 0.0
    %1782 = vmatprep.subr.mxu0 0.0
    %1783 = vmatpush2.msra.mxu0 0.0
    %1784 = vmatprep.subr.mxu0 0.0
    %1785 = vmatpush2.msra.mxu0 0.0
    %1786 = vmatprep.subr.mxu0 0.0
    %1787 = vmatpush2.msra.mxu0 0.0
    %1788 = vmatprep.subr.mxu0 0.0
    %1789 = vmatpush2.msra.mxu0 0.0
    %1790 = vmatprep.mubr.f32.mxu0 0.0
    %1791 = vmatmul.mubr.f32.gmra.mxu0 %v220
    %v1792 = vpop.f32.mrf.mxu0
    %v1793 = vadd.f32 %v1508, %v1792
    %v1794 = vpop.f32.mrf.mxu0
    %1795 = vmatprep.mubr.f32.mxu0 0.0
    %1796 = vmatmul.mubr.f32.gmra.mxu0 %v223
    %v1797 = vpop.f32.mrf.mxu0
    %v1798 = vadd.f32 %v1509, %v1797
    %v1799 = vpop.f32.mrf.mxu0
    %1800 = vmatprep.mubr.f32.mxu0 0.0
    %1801 = vmatmul.mubr.f32.gmra.mxu0 %v226
    %v1802 = vpop.f32.mrf.mxu0
    %v1803 = vadd.f32 %v1510, %v1802
    %v1804 = vpop.f32.mrf.mxu0
    %1805 = vmatprep.mubr.f32.mxu0 0.0
    %1806 = vmatmul.mubr.f32.gmra.mxu0 %v229
    %v1807 = vpop.f32.mrf.mxu0
    %v1808 = vadd.f32 %v1511, %v1807
    %v1809 = vpop.f32.mrf.mxu0
    %1810 = vmatprep.mubr.f32.mxu0 0.0
    %1811 = vmatmul.mubr.f32.gmra.mxu0 %v232
    %v1812 = vpop.f32.mrf.mxu0
    %v1813 = vadd.f32 %v1512, %v1812
    %v1814 = vpop.f32.mrf.mxu0
    %1815 = vmatprep.mubr.f32.mxu0 0.0
    %1816 = vmatmul.mubr.f32.gmra.mxu0 %v235
    %v1817 = vpop.f32.mrf.mxu0
    %v1818 = vadd.f32 %v1513, %v1817
    %v1819 = vpop.f32.mrf.mxu0
    %1820 = vmatprep.mubr.f32.mxu0 0.0
    %1821 = vmatmul.mubr.f32.gmra.mxu0 %v238
    %v1822 = vpop.f32.mrf.mxu0
    %v1823 = vadd.f32 %v1514, %v1822
    %v1824 = vpop.f32.mrf.mxu0
    %1825 = vmatprep.mubr.f32.mxu0 0.0
    %1826 = vmatmul.mubr.f32.gmra.mxu0 %v241
    %v1827 = vpop.f32.mrf.mxu0
    %v1828 = vadd.f32 %v1515, %v1827
    %v1829 = vpop.f32.mrf.mxu0
    %1830 = vdwg.mxu0
    %1831 = vmatprep.subr.mxu0 0.0
    %1832 = vmatpush1.msra.mxu0 0.0
    %1833 = vmatprep.subr.mxu0 0.0
    %1834 = vmatpush1.msra.mxu0 0.0
    %1835 = vmatprep.subr.mxu0 0.0
    %1836 = vmatpush1.msra.mxu0 0.0
    %1837 = vmatprep.subr.mxu0 0.0
    %1838 = vmatpush1.msra.mxu0 0.0
    %1839 = vmatprep.subr.mxu0 0.0
    %1840 = vmatpush1.msra.mxu0 0.0
    %1841 = vmatprep.subr.mxu0 0.0
    %1842 = vmatpush1.msra.mxu0 0.0
    %1843 = vmatprep.subr.mxu0 0.0
    %1844 = vmatpush1.msra.mxu0 0.0
    %1845 = vmatprep.subr.mxu0 0.0
    %1846 = vmatpush1.msra.mxu0 0.0
    %1847 = vmatprep.subr.mxu0 0.0
    %1848 = vmatpush1.msra.mxu0 %v1828
    %1849 = vmatprep.subr.mxu0 0.0
    %1850 = vmatpush1.msra.mxu0 %v1823
    %1851 = vmatprep.subr.mxu0 0.0
    %1852 = vmatpush1.msra.mxu0 %v1818
    %1853 = vmatprep.subr.mxu0 0.0
    %1854 = vmatpush1.msra.mxu0 %v1813
    %1855 = vmatprep.subr.mxu0 0.0
    %1856 = vmatpush1.msra.mxu0 %v1808
    %1857 = vmatprep.subr.mxu0 0.0
    %1858 = vmatpush1.msra.mxu0 %v1803
    %1859 = vmatprep.subr.mxu0 0.0
    %1860 = vmatpush1.msra.mxu0 %v1798
    %1861 = vmatprep.subr.mxu0 0.0
    %1862 = vmatpush1.msra.mxu0 %v1793
    %1863 = vmatprep.subr.mxu0 0.0
    %1864 = vmatpush2.msra.mxu0 0.0
    %1865 = vmatprep.subr.mxu0 0.0
    %1866 = vmatpush2.msra.mxu0 0.0
    %1867 = vmatprep.subr.mxu0 0.0
    %1868 = vmatpush2.msra.mxu0 0.0
    %1869 = vmatprep.subr.mxu0 0.0
    %1870 = vmatpush2.msra.mxu0 0.0
    %1871 = vmatprep.subr.mxu0 0.0
    %1872 = vmatpush2.msra.mxu0 0.0
    %1873 = vmatprep.subr.mxu0 0.0
    %1874 = vmatpush2.msra.mxu0 0.0
    %1875 = vmatprep.subr.mxu0 0.0
    %1876 = vmatpush2.msra.mxu0 0.0
    %1877 = vmatprep.subr.mxu0 0.0
    %1878 = vmatpush2.msra.mxu0 0.0
    %1879 = vmatprep.subr.mxu0 0.0
    %1880 = vmatpush2.msra.mxu0 0.0
    %1881 = vmatprep.subr.mxu0 0.0
    %1882 = vmatpush2.msra.mxu0 0.0
    %1883 = vmatprep.subr.mxu0 0.0
    %1884 = vmatpush2.msra.mxu0 0.0
    %1885 = vmatprep.subr.mxu0 0.0
    %1886 = vmatpush2.msra.mxu0 0.0
    %1887 = vmatprep.subr.mxu0 0.0
    %1888 = vmatpush2.msra.mxu0 0.0
    %1889 = vmatprep.subr.mxu0 0.0
    %1890 = vmatpush2.msra.mxu0 0.0
    %1891 = vmatprep.subr.mxu0 0.0
    %1892 = vmatpush2.msra.mxu0 0.0
    %1893 = vmatprep.subr.mxu0 0.0
    %1894 = vmatpush2.msra.mxu0 0.0
    %1895 = vmatprep.mubr.f32.mxu0 0.0
    %1896 = vmatmul.mubr.f32.gmra.mxu0 %v220
    %v1897 = vpop.f32.mrf.mxu0
    %v1898 = vadd.f32 %v1508, %v1897
    %v1899 = vpop.f32.mrf.mxu0
    %1900 = vmatprep.mubr.f32.mxu0 0.0
    %1901 = vmatmul.mubr.f32.gmra.mxu0 %v223
    %v1902 = vpop.f32.mrf.mxu0
    %v1903 = vadd.f32 %v1509, %v1902
    %v1904 = vpop.f32.mrf.mxu0
    %1905 = vmatprep.mubr.f32.mxu0 0.0
    %1906 = vmatmul.mubr.f32.gmra.mxu0 %v226
    %v1907 = vpop.f32.mrf.mxu0
    %v1908 = vadd.f32 %v1510, %v1907
    %v1909 = vpop.f32.mrf.mxu0
    %1910 = vmatprep.mubr.f32.mxu0 0.0
    %1911 = vmatmul.mubr.f32.gmra.mxu0 %v229
    %v1912 = vpop.f32.mrf.mxu0
    %v1913 = vadd.f32 %v1511, %v1912
    %v1914 = vpop.f32.mrf.mxu0
    %1915 = vmatprep.mubr.f32.mxu0 0.0
    %1916 = vmatmul.mubr.f32.gmra.mxu0 %v232
    %v1917 = vpop.f32.mrf.mxu0
    %v1918 = vadd.f32 %v1512, %v1917
    %v1919 = vpop.f32.mrf.mxu0
    %1920 = vmatprep.mubr.f32.mxu0 0.0
    %1921 = vmatmul.mubr.f32.gmra.mxu0 %v235
    %v1922 = vpop.f32.mrf.mxu0
    %v1923 = vadd.f32 %v1513, %v1922
    %v1924 = vpop.f32.mrf.mxu0
    %1925 = vmatprep.mubr.f32.mxu0 0.0
    %1926 = vmatmul.mubr.f32.gmra.mxu0 %v238
    %v1927 = vpop.f32.mrf.mxu0
    %v1928 = vadd.f32 %v1514, %v1927
    %v1929 = vpop.f32.mrf.mxu0
    %1930 = vmatprep.mubr.f32.mxu0 0.0
    %1931 = vmatmul.mubr.f32.gmra.mxu0 %v241
    %v1932 = vpop.f32.mrf.mxu0
    %v1933 = vadd.f32 %v1515, %v1932
    %v1934 = vpop.f32.mrf.mxu0
    %1935 = vdwg.mxu0
    %1936 = vmatprep.subr.mxu0 0.0
    %1937 = vmatpush1.msra.mxu0 0.0
    %1938 = vmatprep.subr.mxu0 0.0
    %1939 = vmatpush1.msra.mxu0 0.0
    %1940 = vmatprep.subr.mxu0 0.0
    %1941 = vmatpush1.msra.mxu0 0.0
    %1942 = vmatprep.subr.mxu0 0.0
    %1943 = vmatpush1.msra.mxu0 0.0
    %1944 = vmatprep.subr.mxu0 0.0
    %1945 = vmatpush1.msra.mxu0 0.0
    %1946 = vmatprep.subr.mxu0 0.0
    %1947 = vmatpush1.msra.mxu0 0.0
    %1948 = vmatprep.subr.mxu0 0.0
    %1949 = vmatpush1.msra.mxu0 0.0
    %1950 = vmatprep.subr.mxu0 0.0
    %1951 = vmatpush1.msra.mxu0 0.0
    %1952 = vmatprep.subr.mxu0 0.0
    %1953 = vmatpush1.msra.mxu0 %v1933
    %1954 = vmatprep.subr.mxu0 0.0
    %1955 = vmatpush1.msra.mxu0 %v1928
    %1956 = vmatprep.subr.mxu0 0.0
    %1957 = vmatpush1.msra.mxu0 %v1923
    %1958 = vmatprep.subr.mxu0 0.0
    %1959 = vmatpush1.msra.mxu0 %v1918
    %1960 = vmatprep.subr.mxu0 0.0
    %1961 = vmatpush1.msra.mxu0 %v1913
    %1962 = vmatprep.subr.mxu0 0.0
    %1963 = vmatpush1.msra.mxu0 %v1908
    %1964 = vmatprep.subr.mxu0 0.0
    %1965 = vmatpush1.msra.mxu0 %v1903
    %1966 = vmatprep.subr.mxu0 0.0
    %1967 = vmatpush1.msra.mxu0 %v1898
    %1968 = vmatprep.subr.mxu0 0.0
    %1969 = vmatpush2.msra.mxu0 0.0
    %1970 = vmatprep.subr.mxu0 0.0
    %1971 = vmatpush2.msra.mxu0 0.0
    %1972 = vmatprep.subr.mxu0 0.0
    %1973 = vmatpush2.msra.mxu0 0.0
    %1974 = vmatprep.subr.mxu0 0.0
    %1975 = vmatpush2.msra.mxu0 0.0
    %1976 = vmatprep.subr.mxu0 0.0
    %1977 = vmatpush2.msra.mxu0 0.0
    %1978 = vmatprep.subr.mxu0 0.0
    %1979 = vmatpush2.msra.mxu0 0.0
    %1980 = vmatprep.subr.mxu0 0.0
    %1981 = vmatpush2.msra.mxu0 0.0
    %1982 = vmatprep.subr.mxu0 0.0
    %1983 = vmatpush2.msra.mxu0 0.0
    %1984 = vmatprep.subr.mxu0 0.0
    %1985 = vmatpush2.msra.mxu0 0.0
    %1986 = vmatprep.subr.mxu0 0.0
    %1987 = vmatpush2.msra.mxu0 0.0
    %1988 = vmatprep.subr.mxu0 0.0
    %1989 = vmatpush2.msra.mxu0 0.0
    %1990 = vmatprep.subr.mxu0 0.0
    %1991 = vmatpush2.msra.mxu0 0.0
    %1992 = vmatprep.subr.mxu0 0.0
    %1993 = vmatpush2.msra.mxu0 0.0
    %1994 = vmatprep.subr.mxu0 0.0
    %1995 = vmatpush2.msra.mxu0 0.0
    %1996 = vmatprep.subr.mxu0 0.0
    %1997 = vmatpush2.msra.mxu0 0.0
    %1998 = vmatprep.subr.mxu0 0.0
    %1999 = vmatpush2.msra.mxu0 0.0
    %2000 = vmatprep.mubr.f32.mxu0 0.0
    %2001 = vmatmul.mubr.f32.gmra.mxu0 %v220
    %v2002 = vpop.f32.mrf.mxu0
    %v2003 = vadd.f32 %v1508, %v2002
    %v2004 = vpop.f32.mrf.mxu0
    %2005 = vmatprep.mubr.f32.mxu0 0.0
    %2006 = vmatmul.mubr.f32.gmra.mxu0 %v223
    %v2007 = vpop.f32.mrf.mxu0
    %v2008 = vadd.f32 %v1509, %v2007
    %v2009 = vpop.f32.mrf.mxu0
    %2010 = vmatprep.mubr.f32.mxu0 0.0
    %2011 = vmatmul.mubr.f32.gmra.mxu0 %v226
    %v2012 = vpop.f32.mrf.mxu0
    %v2013 = vadd.f32 %v1510, %v2012
    %v2014 = vpop.f32.mrf.mxu0
    %2015 = vmatprep.mubr.f32.mxu0 0.0
    %2016 = vmatmul.mubr.f32.gmra.mxu0 %v229
    %v2017 = vpop.f32.mrf.mxu0
    %v2018 = vadd.f32 %v1511, %v2017
    %v2019 = vpop.f32.mrf.mxu0
    %2020 = vmatprep.mubr.f32.mxu0 0.0
    %2021 = vmatmul.mubr.f32.gmra.mxu0 %v232
    %v2022 = vpop.f32.mrf.mxu0
    %v2023 = vadd.f32 %v1512, %v2022
    %v2024 = vpop.f32.mrf.mxu0
    %2025 = vmatprep.mubr.f32.mxu0 0.0
    %2026 = vmatmul.mubr.f32.gmra.mxu0 %v235
    %v2027 = vpop.f32.mrf.mxu0
    %v2028 = vadd.f32 %v1513, %v2027
    %v2029 = vpop.f32.mrf.mxu0
    %2030 = vmatprep.mubr.f32.mxu0 0.0
    %2031 = vmatmul.mubr.f32.gmra.mxu0 %v238
    %v2032 = vpop.f32.mrf.mxu0
    %v2033 = vadd.f32 %v1514, %v2032
    %v2034 = vpop.f32.mrf.mxu0
    %2035 = vmatprep.mubr.f32.mxu0 0.0
    %2036 = vmatmul.mubr.f32.gmra.mxu0 %v241
    %v2037 = vpop.f32.mrf.mxu0
    %v2038 = vadd.f32 %v1515, %v2037
    %v2039 = vpop.f32.mrf.mxu0
    %2040 = vdwg.mxu0
    %2041 = vmatprep.subr.mxu0 0.0
    %2042 = vmatpush1.msra.mxu0 0.0
    %2043 = vmatprep.subr.mxu0 0.0
    %2044 = vmatpush1.msra.mxu0 0.0
    %2045 = vmatprep.subr.mxu0 0.0
    %2046 = vmatpush1.msra.mxu0 0.0
    %2047 = vmatprep.subr.mxu0 0.0
    %2048 = vmatpush1.msra.mxu0 0.0
    %2049 = vmatprep.subr.mxu0 0.0
    %2050 = vmatpush1.msra.mxu0 0.0
    %2051 = vmatprep.subr.mxu0 0.0
    %2052 = vmatpush1.msra.mxu0 0.0
    %2053 = vmatprep.subr.mxu0 0.0
    %2054 = vmatpush1.msra.mxu0 0.0
    %2055 = vmatprep.subr.mxu0 0.0
    %2056 = vmatpush1.msra.mxu0 0.0
    %2057 = vmatprep.subr.mxu0 0.0
    %2058 = vmatpush1.msra.mxu0 %v2038
    %2059 = vmatprep.subr.mxu0 0.0
    %2060 = vmatpush1.msra.mxu0 %v2033
    %2061 = vmatprep.subr.mxu0 0.0
    %2062 = vmatpush1.msra.mxu0 %v2028
    %2063 = vmatprep.subr.mxu0 0.0
    %2064 = vmatpush1.msra.mxu0 %v2023
    %2065 = vmatprep.subr.mxu0 0.0
    %2066 = vmatpush1.msra.mxu0 %v2018
    %2067 = vmatprep.subr.mxu0 0.0
    %2068 = vmatpush1.msra.mxu0 %v2013
    %2069 = vmatprep.subr.mxu0 0.0
    %2070 = vmatpush1.msra.mxu0 %v2008
    %2071 = vmatprep.subr.mxu0 0.0
    %2072 = vmatpush1.msra.mxu0 %v2003
    %2073 = vmatprep.subr.mxu0 0.0
    %2074 = vmatpush2.msra.mxu0 0.0
    %2075 = vmatprep.subr.mxu0 0.0
    %2076 = vmatpush2.msra.mxu0 0.0
    %2077 = vmatprep.subr.mxu0 0.0
    %2078 = vmatpush2.msra.mxu0 0.0
    %2079 = vmatprep.subr.mxu0 0.0
    %2080 = vmatpush2.msra.mxu0 0.0
    %2081 = vmatprep.subr.mxu0 0.0
    %2082 = vmatpush2.msra.mxu0 0.0
    %2083 = vmatprep.subr.mxu0 0.0
    %2084 = vmatpush2.msra.mxu0 0.0
    %2085 = vmatprep.subr.mxu0 0.0
    %2086 = vmatpush2.msra.mxu0 0.0
    %2087 = vmatprep.subr.mxu0 0.0
    %2088 = vmatpush2.msra.mxu0 0.0
    %2089 = vmatprep.subr.mxu0 0.0
    %2090 = vmatpush2.msra.mxu0 0.0
    %2091 = vmatprep.subr.mxu0 0.0
    %2092 = vmatpush2.msra.mxu0 0.0
    %2093 = vmatprep.subr.mxu0 0.0
    %2094 = vmatpush2.msra.mxu0 0.0
    %2095 = vmatprep.subr.mxu0 0.0
    %2096 = vmatpush2.msra.mxu0 0.0
    %2097 = vmatprep.subr.mxu0 0.0
    %2098 = vmatpush2.msra.mxu0 0.0
    %2099 = vmatprep.subr.mxu0 0.0
    %2100 = vmatpush2.msra.mxu0 0.0
    %2101 = vmatprep.subr.mxu0 0.0
    %2102 = vmatpush2.msra.mxu0 0.0
    %2103 = vmatprep.subr.mxu0 0.0
    %2104 = vmatpush2.msra.mxu0 0.0
    %2105 = vmatprep.mubr.f32.mxu0 0.0
    %2106 = vmatmul.mubr.f32.gmra.mxu0 %v220
    %v2107 = vpop.f32.mrf.mxu0
    %v2108 = vadd.f32 %v1508, %v2107
    %v2109 = vpop.f32.mrf.mxu0
    %2110 = vmatprep.mubr.f32.mxu0 0.0
    %2111 = vmatmul.mubr.f32.gmra.mxu0 %v223
    %v2112 = vpop.f32.mrf.mxu0
    %v2113 = vadd.f32 %v1509, %v2112
    %v2114 = vpop.f32.mrf.mxu0
    %2115 = vmatprep.mubr.f32.mxu0 0.0
    %2116 = vmatmul.mubr.f32.gmra.mxu0 %v226
    %v2117 = vpop.f32.mrf.mxu0
    %v2118 = vadd.f32 %v1510, %v2117
    %v2119 = vpop.f32.mrf.mxu0
    %2120 = vmatprep.mubr.f32.mxu0 0.0
    %2121 = vmatmul.mubr.f32.gmra.mxu0 %v229
    %v2122 = vpop.f32.mrf.mxu0
    %v2123 = vadd.f32 %v1511, %v2122
    %v2124 = vpop.f32.mrf.mxu0
    %2125 = vmatprep.mubr.f32.mxu0 0.0
    %2126 = vmatmul.mubr.f32.gmra.mxu0 %v232
    %v2127 = vpop.f32.mrf.mxu0
    %v2128 = vadd.f32 %v1512, %v2127
    %v2129 = vpop.f32.mrf.mxu0
    %2130 = vmatprep.mubr.f32.mxu0 0.0
    %2131 = vmatmul.mubr.f32.gmra.mxu0 %v235
    %v2132 = vpop.f32.mrf.mxu0
    %v2133 = vadd.f32 %v1513, %v2132
    %v2134 = vpop.f32.mrf.mxu0
    %2135 = vmatprep.mubr.f32.mxu0 0.0
    %2136 = vmatmul.mubr.f32.gmra.mxu0 %v238
    %v2137 = vpop.f32.mrf.mxu0
    %v2138 = vadd.f32 %v1514, %v2137
    %v2139 = vpop.f32.mrf.mxu0
    %2140 = vmatprep.mubr.f32.mxu0 0.0
    %2141 = vmatmul.mubr.f32.gmra.mxu0 %v241
    %v2142 = vpop.f32.mrf.mxu0
    %v2143 = vadd.f32 %v1515, %v2142
    %v2144 = vpop.f32.mrf.mxu0
    %2145 = vdwg.mxu0
    %2146 = vmatprep.subr.mxu0 0.0
    %2147 = vmatpush1.msra.mxu0 0.0
    %2148 = vmatprep.subr.mxu0 0.0
    %2149 = vmatpush1.msra.mxu0 0.0
    %2150 = vmatprep.subr.mxu0 0.0
    %2151 = vmatpush1.msra.mxu0 0.0
    %2152 = vmatprep.subr.mxu0 0.0
    %2153 = vmatpush1.msra.mxu0 0.0
    %2154 = vmatprep.subr.mxu0 0.0
    %2155 = vmatpush1.msra.mxu0 0.0
    %2156 = vmatprep.subr.mxu0 0.0
    %2157 = vmatpush1.msra.mxu0 0.0
    %2158 = vmatprep.subr.mxu0 0.0
    %2159 = vmatpush1.msra.mxu0 0.0
    %2160 = vmatprep.subr.mxu0 0.0
    %2161 = vmatpush1.msra.mxu0 0.0
    %2162 = vmatprep.subr.mxu0 0.0
    %2163 = vmatpush1.msra.mxu0 %v2143
    %2164 = vmatprep.subr.mxu0 0.0
    %2165 = vmatpush1.msra.mxu0 %v2138
    %2166 = vmatprep.subr.mxu0 0.0
    %2167 = vmatpush1.msra.mxu0 %v2133
    %2168 = vmatprep.subr.mxu0 0.0
    %2169 = vmatpush1.msra.mxu0 %v2128
    %2170 = vmatprep.subr.mxu0 0.0
    %2171 = vmatpush1.msra.mxu0 %v2123
    %2172 = vmatprep.subr.mxu0 0.0
    %2173 = vmatpush1.msra.mxu0 %v2118
    %2174 = vmatprep.subr.mxu0 0.0
    %2175 = vmatpush1.msra.mxu0 %v2113
    %2176 = vmatprep.subr.mxu0 0.0
    %2177 = vmatpush1.msra.mxu0 %v2108
    %2178 = vmatprep.subr.mxu0 0.0
    %2179 = vmatpush2.msra.mxu0 0.0
    %2180 = vmatprep.subr.mxu0 0.0
    %2181 = vmatpush2.msra.mxu0 0.0
    %2182 = vmatprep.subr.mxu0 0.0
    %2183 = vmatpush2.msra.mxu0 0.0
    %2184 = vmatprep.subr.mxu0 0.0
    %2185 = vmatpush2.msra.mxu0 0.0
    %2186 = vmatprep.subr.mxu0 0.0
    %2187 = vmatpush2.msra.mxu0 0.0
    %2188 = vmatprep.subr.mxu0 0.0
    %2189 = vmatpush2.msra.mxu0 0.0
    %2190 = vmatprep.subr.mxu0 0.0
    %2191 = vmatpush2.msra.mxu0 0.0
    %2192 = vmatprep.subr.mxu0 0.0
    %2193 = vmatpush2.msra.mxu0 0.0
    %2194 = vmatprep.subr.mxu0 0.0
    %2195 = vmatpush2.msra.mxu0 0.0
    %2196 = vmatprep.subr.mxu0 0.0
    %2197 = vmatpush2.msra.mxu0 0.0
    %2198 = vmatprep.subr.mxu0 0.0
    %2199 = vmatpush2.msra.mxu0 0.0
    %2200 = vmatprep.subr.mxu0 0.0
    %2201 = vmatpush2.msra.mxu0 0.0
    %2202 = vmatprep.subr.mxu0 0.0
    %2203 = vmatpush2.msra.mxu0 0.0
    %2204 = vmatprep.subr.mxu0 0.0
    %2205 = vmatpush2.msra.mxu0 0.0
    %2206 = vmatprep.subr.mxu0 0.0
    %2207 = vmatpush2.msra.mxu0 0.0
    %2208 = vmatprep.subr.mxu0 0.0
    %2209 = vmatpush2.msra.mxu0 0.0
    %2210 = vmatprep.mubr.f32.mxu0 0.0
    %2211 = vmatmul.mubr.f32.gmra.mxu0 %v220
    %v2212 = vpop.f32.mrf.mxu0
    %v2213 = vadd.f32 %v1508, %v2212
    %v2214 = vpop.f32.mrf.mxu0
    %2215 = vmatprep.mubr.f32.mxu0 0.0
    %2216 = vmatmul.mubr.f32.gmra.mxu0 %v223
    %v2217 = vpop.f32.mrf.mxu0
    %v2218 = vadd.f32 %v1509, %v2217
    %v2219 = vpop.f32.mrf.mxu0
    %2220 = vmatprep.mubr.f32.mxu0 0.0
    %2221 = vmatmul.mubr.f32.gmra.mxu0 %v226
    %v2222 = vpop.f32.mrf.mxu0
    %v2223 = vadd.f32 %v1510, %v2222
    %v2224 = vpop.f32.mrf.mxu0
    %2225 = vmatprep.mubr.f32.mxu0 0.0
    %2226 = vmatmul.mubr.f32.gmra.mxu0 %v229
    %v2227 = vpop.f32.mrf.mxu0
    %v2228 = vadd.f32 %v1511, %v2227
    %v2229 = vpop.f32.mrf.mxu0
    %2230 = vmatprep.mubr.f32.mxu0 0.0
    %2231 = vmatmul.mubr.f32.gmra.mxu0 %v232
    %v2232 = vpop.f32.mrf.mxu0
    %v2233 = vadd.f32 %v1512, %v2232
    %v2234 = vpop.f32.mrf.mxu0
    %2235 = vmatprep.mubr.f32.mxu0 0.0
    %2236 = vmatmul.mubr.f32.gmra.mxu0 %v235
    %v2237 = vpop.f32.mrf.mxu0
    %v2238 = vadd.f32 %v1513, %v2237
    %v2239 = vpop.f32.mrf.mxu0
    %2240 = vmatprep.mubr.f32.mxu0 0.0
    %2241 = vmatmul.mubr.f32.gmra.mxu0 %v238
    %v2242 = vpop.f32.mrf.mxu0
    %v2243 = vadd.f32 %v1514, %v2242
    %v2244 = vpop.f32.mrf.mxu0
    %2245 = vmatprep.mubr.f32.mxu0 0.0
    %2246 = vmatmul.mubr.f32.gmra.mxu0 %v241
    %v2247 = vpop.f32.mrf.mxu0
    %v2248 = vadd.f32 %v1515, %v2247
    %v2249 = vpop.f32.mrf.mxu0
    %2250 = vdwg.mxu0
    %2251 = vmatprep.subr.mxu0 0.0
    %2252 = vmatpush1.msra.mxu0 0.0
    %2253 = vmatprep.subr.mxu0 0.0
    %2254 = vmatpush1.msra.mxu0 0.0
    %2255 = vmatprep.subr.mxu0 0.0
    %2256 = vmatpush1.msra.mxu0 0.0
    %2257 = vmatprep.subr.mxu0 0.0
    %2258 = vmatpush1.msra.mxu0 0.0
    %2259 = vmatprep.subr.mxu0 0.0
    %2260 = vmatpush1.msra.mxu0 0.0
    %2261 = vmatprep.subr.mxu0 0.0
    %2262 = vmatpush1.msra.mxu0 0.0
    %2263 = vmatprep.subr.mxu0 0.0
    %2264 = vmatpush1.msra.mxu0 0.0
    %2265 = vmatprep.subr.mxu0 0.0
    %2266 = vmatpush1.msra.mxu0 0.0
    %2267 = vmatprep.subr.mxu0 0.0
    %2268 = vmatpush1.msra.mxu0 %v2248
    %2269 = vmatprep.subr.mxu0 0.0
    %2270 = vmatpush1.msra.mxu0 %v2243
    %2271 = vmatprep.subr.mxu0 0.0
    %2272 = vmatpush1.msra.mxu0 %v2238
    %2273 = vmatprep.subr.mxu0 0.0
    %2274 = vmatpush1.msra.mxu0 %v2233
    %2275 = vmatprep.subr.mxu0 0.0
    %2276 = vmatpush1.msra.mxu0 %v2228
    %2277 = vmatprep.subr.mxu0 0.0
    %2278 = vmatpush1.msra.mxu0 %v2223
    %2279 = vmatprep.subr.mxu0 0.0
    %2280 = vmatpush1.msra.mxu0 %v2218
    %2281 = vmatprep.subr.mxu0 0.0
    %2282 = vmatpush1.msra.mxu0 %v2213
    %2283 = vmatprep.subr.mxu0 0.0
    %2284 = vmatpush2.msra.mxu0 0.0
    %2285 = vmatprep.subr.mxu0 0.0
    %2286 = vmatpush2.msra.mxu0 0.0
    %2287 = vmatprep.subr.mxu0 0.0
    %2288 = vmatpush2.msra.mxu0 0.0
    %2289 = vmatprep.subr.mxu0 0.0
    %2290 = vmatpush2.msra.mxu0 0.0
    %2291 = vmatprep.subr.mxu0 0.0
    %2292 = vmatpush2.msra.mxu0 0.0
    %2293 = vmatprep.subr.mxu0 0.0
    %2294 = vmatpush2.msra.mxu0 0.0
    %2295 = vmatprep.subr.mxu0 0.0
    %2296 = vmatpush2.msra.mxu0 0.0
    %2297 = vmatprep.subr.mxu0 0.0
    %2298 = vmatpush2.msra.mxu0 0.0
    %2299 = vmatprep.subr.mxu0 0.0
    %2300 = vmatpush2.msra.mxu0 0.0
    %2301 = vmatprep.subr.mxu0 0.0
    %2302 = vmatpush2.msra.mxu0 0.0
    %2303 = vmatprep.subr.mxu0 0.0
    %2304 = vmatpush2.msra.mxu0 0.0
    %2305 = vmatprep.subr.mxu0 0.0
    %2306 = vmatpush2.msra.mxu0 0.0
    %2307 = vmatprep.subr.mxu0 0.0
    %2308 = vmatpush2.msra.mxu0 0.0
    %2309 = vmatprep.subr.mxu0 0.0
    %2310 = vmatpush2.msra.mxu0 0.0
    %2311 = vmatprep.subr.mxu0 0.0
    %2312 = vmatpush2.msra.mxu0 0.0
    %2313 = vmatprep.subr.mxu0 0.0
    %2314 = vmatpush2.msra.mxu0 0.0
    %2315 = vmatprep.mubr.f32.mxu0 0.0
    %2316 = vmatmul.mubr.f32.gmra.mxu0 %v220
    %v2317 = vpop.f32.mrf.mxu0
    %v2318 = vadd.f32 %v1508, %v2317
    %v2319 = vpop.f32.mrf.mxu0
    %2320 = vmatprep.mubr.f32.mxu0 0.0
    %2321 = vmatmul.mubr.f32.gmra.mxu0 %v223
    %v2322 = vpop.f32.mrf.mxu0
    %v2323 = vadd.f32 %v1509, %v2322
    %v2324 = vpop.f32.mrf.mxu0
    %2325 = vmatprep.mubr.f32.mxu0 0.0
    %2326 = vmatmul.mubr.f32.gmra.mxu0 %v226
    %v2327 = vpop.f32.mrf.mxu0
    %v2328 = vadd.f32 %v1510, %v2327
    %v2329 = vpop.f32.mrf.mxu0
    %2330 = vmatprep.mubr.f32.mxu0 0.0
    %2331 = vmatmul.mubr.f32.gmra.mxu0 %v229
    %v2332 = vpop.f32.mrf.mxu0
    %v2333 = vadd.f32 %v1511, %v2332
    %v2334 = vpop.f32.mrf.mxu0
    %2335 = vmatprep.mubr.f32.mxu0 0.0
    %2336 = vmatmul.mubr.f32.gmra.mxu0 %v232
    %v2337 = vpop.f32.mrf.mxu0
    %v2338 = vadd.f32 %v1512, %v2337
    %v2339 = vpop.f32.mrf.mxu0
    %2340 = vmatprep.mubr.f32.mxu0 0.0
    %2341 = vmatmul.mubr.f32.gmra.mxu0 %v235
    %v2342 = vpop.f32.mrf.mxu0
    %v2343 = vadd.f32 %v1513, %v2342
    %v2344 = vpop.f32.mrf.mxu0
    %2345 = vmatprep.mubr.f32.mxu0 0.0
    %2346 = vmatmul.mubr.f32.gmra.mxu0 %v238
    %v2347 = vpop.f32.mrf.mxu0
    %v2348 = vadd.f32 %v1514, %v2347
    %v2349 = vpop.f32.mrf.mxu0
    %2350 = vmatprep.mubr.f32.mxu0 0.0
    %2351 = vmatmul.mubr.f32.gmra.mxu0 %v241
    %v2352 = vpop.f32.mrf.mxu0
    %v2353 = vadd.f32 %v1515, %v2352
    %v2354 = vpop.f32.mrf.mxu0
    %2355 = vdwg.mxu0
    %2356 = vmatprep.subr.mxu0 0.0
    %2357 = vmatpush1.msra.mxu0 0.0
    %2358 = vmatprep.subr.mxu0 0.0
    %2359 = vmatpush1.msra.mxu0 0.0
    %2360 = vmatprep.subr.mxu0 0.0
    %2361 = vmatpush1.msra.mxu0 0.0
    %2362 = vmatprep.subr.mxu0 0.0
    %2363 = vmatpush1.msra.mxu0 0.0
    %2364 = vmatprep.subr.mxu0 0.0
    %2365 = vmatpush1.msra.mxu0 0.0
    %2366 = vmatprep.subr.mxu0 0.0
    %2367 = vmatpush1.msra.mxu0 0.0
    %2368 = vmatprep.subr.mxu0 0.0
    %2369 = vmatpush1.msra.mxu0 0.0
    %2370 = vmatprep.subr.mxu0 0.0
    %2371 = vmatpush1.msra.mxu0 0.0
    %2372 = vmatprep.subr.mxu0 0.0
    %2373 = vmatpush1.msra.mxu0 %v2353
    %2374 = vmatprep.subr.mxu0 0.0
    %2375 = vmatpush1.msra.mxu0 %v2348
    %2376 = vmatprep.subr.mxu0 0.0
    %2377 = vmatpush1.msra.mxu0 %v2343
    %2378 = vmatprep.subr.mxu0 0.0
    %2379 = vmatpush1.msra.mxu0 %v2338
    %2380 = vmatprep.subr.mxu0 0.0
    %2381 = vmatpush1.msra.mxu0 %v2333
    %2382 = vmatprep.subr.mxu0 0.0
    %2383 = vmatpush1.msra.mxu0 %v2328
    %2384 = vmatprep.subr.mxu0 0.0
    %2385 = vmatpush1.msra.mxu0 %v2323
    %2386 = vmatprep.subr.mxu0 0.0
    %2387 = vmatpush1.msra.mxu0 %v2318
    %2388 = vmatprep.subr.mxu0 0.0
    %2389 = vmatpush2.msra.mxu0 0.0
    %2390 = vmatprep.subr.mxu0 0.0
    %2391 = vmatpush2.msra.mxu0 0.0
    %2392 = vmatprep.subr.mxu0 0.0
    %2393 = vmatpush2.msra.mxu0 0.0
    %2394 = vmatprep.subr.mxu0 0.0
    %2395 = vmatpush2.msra.mxu0 0.0
    %2396 = vmatprep.subr.mxu0 0.0
    %2397 = vmatpush2.msra.mxu0 0.0
    %2398 = vmatprep.subr.mxu0 0.0
    %2399 = vmatpush2.msra.mxu0 0.0
    %2400 = vmatprep.subr.mxu0 0.0
    %2401 = vmatpush2.msra.mxu0 0.0
    %2402 = vmatprep.subr.mxu0 0.0
    %2403 = vmatpush2.msra.mxu0 0.0
    %2404 = vmatprep.subr.mxu0 0.0
    %2405 = vmatpush2.msra.mxu0 0.0
    %2406 = vmatprep.subr.mxu0 0.0
    %2407 = vmatpush2.msra.mxu0 0.0
    %2408 = vmatprep.subr.mxu0 0.0
    %2409 = vmatpush2.msra.mxu0 0.0
    %2410 = vmatprep.subr.mxu0 0.0
    %2411 = vmatpush2.msra.mxu0 0.0
    %2412 = vmatprep.subr.mxu0 0.0
    %2413 = vmatpush2.msra.mxu0 0.0
    %2414 = vmatprep.subr.mxu0 0.0
    %2415 = vmatpush2.msra.mxu0 0.0
    %2416 = vmatprep.subr.mxu0 0.0
    %2417 = vmatpush2.msra.mxu0 0.0
    %2418 = vmatprep.subr.mxu0 0.0
    %2419 = vmatpush2.msra.mxu0 0.0
    %2420 = vmatprep.mubr.f32.mxu0 0.0
    %2421 = vmatmul.mubr.f32.gmra.mxu0 %v220
    %v2422 = vpop.f32.mrf.mxu0
    %v2423 = vadd.f32 %v1508, %v2422
    %v2424 = vpop.f32.mrf.mxu0
    %2425 = vmatprep.mubr.f32.mxu0 0.0
    %2426 = vmatmul.mubr.f32.gmra.mxu0 %v223
    %v2427 = vpop.f32.mrf.mxu0
    %v2428 = vadd.f32 %v1509, %v2427
    %v2429 = vpop.f32.mrf.mxu0
    %2430 = vmatprep.mubr.f32.mxu0 0.0
    %2431 = vmatmul.mubr.f32.gmra.mxu0 %v226
    %v2432 = vpop.f32.mrf.mxu0
    %v2433 = vadd.f32 %v1510, %v2432
    %v2434 = vpop.f32.mrf.mxu0
    %2435 = vmatprep.mubr.f32.mxu0 0.0
    %2436 = vmatmul.mubr.f32.gmra.mxu0 %v229
    %v2437 = vpop.f32.mrf.mxu0
    %v2438 = vadd.f32 %v1511, %v2437
    %v2439 = vpop.f32.mrf.mxu0
    %2440 = vmatprep.mubr.f32.mxu0 0.0
    %2441 = vmatmul.mubr.f32.gmra.mxu0 %v232
    %v2442 = vpop.f32.mrf.mxu0
    %v2443 = vadd.f32 %v1512, %v2442
    %v2444 = vpop.f32.mrf.mxu0
    %2445 = vmatprep.mubr.f32.mxu0 0.0
    %2446 = vmatmul.mubr.f32.gmra.mxu0 %v235
    %v2447 = vpop.f32.mrf.mxu0
    %v2448 = vadd.f32 %v1513, %v2447
    %v2449 = vpop.f32.mrf.mxu0
    %2450 = vmatprep.mubr.f32.mxu0 0.0
    %2451 = vmatmul.mubr.f32.gmra.mxu0 %v238
    %v2452 = vpop.f32.mrf.mxu0
    %v2453 = vadd.f32 %v1514, %v2452
    %v2454 = vpop.f32.mrf.mxu0
    %2455 = vmatprep.mubr.f32.mxu0 0.0
    %2456 = vmatmul.mubr.f32.gmra.mxu0 %v241
    %v2457 = vpop.f32.mrf.mxu0
    %v2458 = vadd.f32 %v1515, %v2457
    %v2459 = vpop.f32.mrf.mxu0
    %2460 = vdwg.mxu0
    %2461 = vmatprep.subr.mxu0 0.0
    %2462 = vmatpush1.msra.mxu0 0.0
    %2463 = vmatprep.subr.mxu0 0.0
    %2464 = vmatpush1.msra.mxu0 0.0
    %2465 = vmatprep.subr.mxu0 0.0
    %2466 = vmatpush1.msra.mxu0 0.0
    %2467 = vmatprep.subr.mxu0 0.0
    %2468 = vmatpush1.msra.mxu0 0.0
    %2469 = vmatprep.subr.mxu0 0.0
    %2470 = vmatpush1.msra.mxu0 0.0
    %2471 = vmatprep.subr.mxu0 0.0
    %2472 = vmatpush1.msra.mxu0 0.0
    %2473 = vmatprep.subr.mxu0 0.0
    %2474 = vmatpush1.msra.mxu0 0.0
    %2475 = vmatprep.subr.mxu0 0.0
    %2476 = vmatpush1.msra.mxu0 0.0
    %2477 = vmatprep.subr.mxu0 0.0
    %2478 = vmatpush1.msra.mxu0 %v2458
    %2479 = vmatprep.subr.mxu0 0.0
    %2480 = vmatpush1.msra.mxu0 %v2453
    %2481 = vmatprep.subr.mxu0 0.0
    %2482 = vmatpush1.msra.mxu0 %v2448
    %2483 = vmatprep.subr.mxu0 0.0
    %2484 = vmatpush1.msra.mxu0 %v2443
    %2485 = vmatprep.subr.mxu0 0.0
    %2486 = vmatpush1.msra.mxu0 %v2438
    %2487 = vmatprep.subr.mxu0 0.0
    %2488 = vmatpush1.msra.mxu0 %v2433
    %2489 = vmatprep.subr.mxu0 0.0
    %2490 = vmatpush1.msra.mxu0 %v2428
    %2491 = vmatprep.subr.mxu0 0.0
    %2492 = vmatpush1.msra.mxu0 %v2423
    %2493 = vmatprep.subr.mxu0 0.0
    %2494 = vmatpush2.msra.mxu0 0.0
    %2495 = vmatprep.subr.mxu0 0.0
    %2496 = vmatpush2.msra.mxu0 0.0
    %2497 = vmatprep.subr.mxu0 0.0
    %2498 = vmatpush2.msra.mxu0 0.0
    %2499 = vmatprep.subr.mxu0 0.0
    %2500 = vmatpush2.msra.mxu0 0.0
    %2501 = vmatprep.subr.mxu0 0.0
    %2502 = vmatpush2.msra.mxu0 0.0
    %2503 = vmatprep.subr.mxu0 0.0
    %2504 = vmatpush2.msra.mxu0 0.0
    %2505 = vmatprep.subr.mxu0 0.0
    %2506 = vmatpush2.msra.mxu0 0.0
    %2507 = vmatprep.subr.mxu0 0.0
    %2508 = vmatpush2.msra.mxu0 0.0
    %2509 = vmatprep.subr.mxu0 0.0
    %2510 = vmatpush2.msra.mxu0 0.0
    %2511 = vmatprep.subr.mxu0 0.0
    %2512 = vmatpush2.msra.mxu0 0.0
    %2513 = vmatprep.subr.mxu0 0.0
    %2514 = vmatpush2.msra.mxu0 0.0
    %2515 = vmatprep.subr.mxu0 0.0
    %2516 = vmatpush2.msra.mxu0 0.0
    %2517 = vmatprep.subr.mxu0 0.0
    %2518 = vmatpush2.msra.mxu0 0.0
    %2519 = vmatprep.subr.mxu0 0.0
    %2520 = vmatpush2.msra.mxu0 0.0
    %2521 = vmatprep.subr.mxu0 0.0
    %2522 = vmatpush2.msra.mxu0 0.0
    %2523 = vmatprep.subr.mxu0 0.0
    %2524 = vmatpush2.msra.mxu0 0.0
    %2525 = vmatprep.mubr.f32.mxu0 0.0
    %2526 = vmatmul.mubr.f32.gmra.mxu0 %v220
    %v2527 = vpop.f32.mrf.mxu0
    %v2528 = vadd.f32 %v1508, %v2527
    %v2529 = vpop.f32.mrf.mxu0
    %2530 = vmatprep.mubr.f32.mxu0 0.0
    %2531 = vmatmul.mubr.f32.gmra.mxu0 %v223
    %v2532 = vpop.f32.mrf.mxu0
    %v2533 = vadd.f32 %v1509, %v2532
    %v2534 = vpop.f32.mrf.mxu0
    %2535 = vmatprep.mubr.f32.mxu0 0.0
    %2536 = vmatmul.mubr.f32.gmra.mxu0 %v226
    %v2537 = vpop.f32.mrf.mxu0
    %v2538 = vadd.f32 %v1510, %v2537
    %v2539 = vpop.f32.mrf.mxu0
    %2540 = vmatprep.mubr.f32.mxu0 0.0
    %2541 = vmatmul.mubr.f32.gmra.mxu0 %v229
    %v2542 = vpop.f32.mrf.mxu0
    %v2543 = vadd.f32 %v1511, %v2542
    %v2544 = vpop.f32.mrf.mxu0
    %2545 = vmatprep.mubr.f32.mxu0 0.0
    %2546 = vmatmul.mubr.f32.gmra.mxu0 %v232
    %v2547 = vpop.f32.mrf.mxu0
    %v2548 = vadd.f32 %v1512, %v2547
    %v2549 = vpop.f32.mrf.mxu0
    %2550 = vmatprep.mubr.f32.mxu0 0.0
    %2551 = vmatmul.mubr.f32.gmra.mxu0 %v235
    %v2552 = vpop.f32.mrf.mxu0
    %v2553 = vadd.f32 %v1513, %v2552
    %v2554 = vpop.f32.mrf.mxu0
    %2555 = vmatprep.mubr.f32.mxu0 0.0
    %2556 = vmatmul.mubr.f32.gmra.mxu0 %v238
    %v2557 = vpop.f32.mrf.mxu0
    %v2558 = vadd.f32 %v1514, %v2557
    %v2559 = vpop.f32.mrf.mxu0
    %2560 = vmatprep.mubr.f32.mxu0 0.0
    %2561 = vmatmul.mubr.f32.gmra.mxu0 %v241
    %v2562 = vpop.f32.mrf.mxu0
    %v2563 = vadd.f32 %v1515, %v2562
    %v2564 = vpop.f32.mrf.mxu0
    %2565 = vdwg.mxu0
    %v2566 = vadd.f32 %v2528, %v2533
    %v2567 = vadd.f32 %v2566, %v2538
    %v2568 = vadd.f32 %v2567, %v2543
    %v2569 = vadd.f32 %v2568, %v2548
    %v2570 = vadd.f32 %v2569, %v2553
    %v2571 = vadd.f32 %v2570, %v2558
    %v2572 = vadd.f32 %v2571, %v2563
    %v2573 = vrot.slane %v2572, 4
    %v2574 = vadd.f32 %v2572, %v2573
    %v2575 = vrot.slane %v2574, 2
    %v2576 = vadd.f32 %v2574, %v2575
    %v2577 = vrot.slane %v2576, 1
    %v2578 = vadd.f32 %v2576, %v2577
    %v2579 = vmul.f32 %v2578, %v1306
    %v2580 = vmul.f32 %v2528, %v2528
    %v2581 = vmul.f32 %v2533, %v2533
    %v2582 = vmul.f32 %v2538, %v2538
    %v2583 = vmul.f32 %v2543, %v2543
    %v2584 = vmul.f32 %v2548, %v2548
    %v2585 = vmul.f32 %v2553, %v2553
    %v2586 = vmul.f32 %v2558, %v2558
    %v2587 = vmul.f32 %v2563, %v2563
    %v2588 = vadd.f32 %v2580, %v2581
    %v2589 = vadd.f32 %v2588, %v2582
    %v2590 = vadd.f32 %v2589, %v2583
    %v2591 = vadd.f32 %v2590, %v2584
    %v2592 = vadd.f32 %v2591, %v2585
    %v2593 = vadd.f32 %v2592, %v2586
    %v2594 = vadd.f32 %v2593, %v2587
    %v2595 = vrot.slane %v2594, 4
    %v2596 = vadd.f32 %v2594, %v2595
    %v2597 = vrot.slane %v2596, 2
    %v2598 = vadd.f32 %v2596, %v2597
    %v2599 = vrot.slane %v2598, 1
    %v2600 = vadd.f32 %v2598, %v2599
    %v2601 = vmul.f32 %v2600, %v1306
    %v2602 = vmul.f32 %v2579, %v2579
    %v2603 = vsub.f32 %v2601, %v2602
    %v2604 = vmax.f32 %v2603, 0.0
    %v2605 = vsub.f32 %v2528, %v2579
    %v2606 = vsub.f32 %v2533, %v2579
    %v2607 = vsub.f32 %v2538, %v2579
    %v2608 = vsub.f32 %v2543, %v2579
    %v2609 = vsub.f32 %v2548, %v2579
    %v2610 = vsub.f32 %v2553, %v2579
    %v2611 = vsub.f32 %v2558, %v2579
    %v2612 = vsub.f32 %v2563, %v2579
    %v2613 = vadd.f32 %v2604, 1e-05
    %v2614 = vrsqrt.pop %v2613
    %v2615 = vmul.f32 %v2605, %v2614
    %v2616 = vmul.f32 %v2606, %v2614
    %v2617 = vmul.f32 %v2607, %v2614
    %v2618 = vmul.f32 %v2608, %v2614
    %v2619 = vmul.f32 %v2609, %v2614
    %v2620 = vmul.f32 %v2610, %v2614
    %v2621 = vmul.f32 %v2611, %v2614
    %v2622 = vmul.f32 %v2612, %v2614
    %v2623 = vlaneseq
    %v2624 = vshrl.u32 %v2623, 7
    %v2625 = vsub.s32 0, %v2624
    %v2626 = vrot.slane %v62, %v2625
    %v2627 = vmul.f32 %v2615, %v2626
    %v2628 = vmul.f32 %v2616, %v2626
    %v2629 = vmul.f32 %v2617, %v2626
    %v2630 = vmul.f32 %v2618, %v2626
    %v2631 = vmul.f32 %v2619, %v2626
    %v2632 = vmul.f32 %v2620, %v2626
    %v2633 = vmul.f32 %v2621, %v2626
    %v2634 = vmul.f32 %v2622, %v2626
    %v2635 = vlaneseq
    %v2636 = vshrl.u32 %v2635, 7
    %v2637 = vsub.s32 0, %v2636
    %v2638 = vrot.slane %v63, %v2637
    %v2639 = vadd.f32 %v2627, %v2638
    %v2640 = vadd.f32 %v2628, %v2638
    %v2641 = vadd.f32 %v2629, %v2638
    %v2642 = vadd.f32 %v2630, %v2638
    %v2643 = vadd.f32 %v2631, %v2638
    %v2644 = vadd.f32 %v2632, %v2638
    %v2645 = vadd.f32 %v2633, %v2638
    %v2646 = vadd.f32 %v2634, %v2638
    %2647 = vst [vmem:[#allocation7] sm:$0xff] %v2639
    %2648 = vst [vmem:[#allocation7 + $0x8] sm:$0xff] %v2640
    %2649 = vst [vmem:[#allocation7 + $0x10] sm:$0xff] %v2641
    %2650 = vst [vmem:[#allocation7 + $0x18] sm:$0xff] %v2642
    %2651 = vst [vmem:[#allocation7 + $0x20] sm:$0xff] %v2643
    %2652 = vst [vmem:[#allocation7 + $0x28] sm:$0xff] %v2644
    %2653 = vst [vmem:[#allocation7 + $0x30] sm:$0xff] %v2645
    %2654 = vst [vmem:[#allocation7 + $0x38] sm:$0xff] %v2646
    // Predicated region
    $region34: #{tpu_custom_call.1} parent=1 // pred_check
      _
    $region35: #{tpu_custom_call.1} parent=1 // pred_check_branch
      %2656 = sbr.rel (0) target = $region37
    $region36: #{tpu_custom_call.1} parent=1 // pred_region
      %s2658 = ssub.s32 1024, 1024
      %2659 = vsyncadd [#allocation4], %s2658
      %s2660 = sshll.u32 [#allocation7], 4
      %s2661 = int_to_ptr.vmem [resolvable:$true] %s2660
      %2666 = dma.vmem_to_hbm [thread:$0]  %s2661, 1024, %s6, [#allocation4], 128, 128, 8
    $region37: #{tpu_custom_call.1} parent=1 // pred_fallthru
      _
    // Predicated region
    $region38: #{tpu_custom_call.1} parent=1 // pred_check
      _
    $region39: #{tpu_custom_call.1} parent=1 // pred_check_branch
      %2668 = sbr.rel (0) target = $region41
    $region40: #{tpu_custom_call.1} parent=1 // pred_region
      %2669 = dma.done [#allocation4], 1024
    $region41: #{tpu_custom_call.1} parent=1 // pred_fallthru
      _
    %2670 = vsyncpa [#allocation3], 1
    %2671 = vsyncpa [#allocation6], 1
    %2672 = vsyncpa [#allocation4], 1

</llo_original>
